<compile_context>
chip_gen: v5e
topology: v5e:2x2
jax: 0.10.0
libtpu: 0.0.40
codegen_flags: <defaults>
</compile_context>

<pallas_src>
import functools
import math

import jax
import jax.numpy as jnp
from jax.experimental import pallas as pl
from jax.experimental.pallas import tpu as pltpu


def _mha_kernel(q_ref, k_ref, v_ref,
                wq_ref, bq_ref, wk_ref, bk_ref, wv_ref, bv_ref,
                wo_ref, bo_ref, out_ref,
                *, num_heads, key_size, value_size, score_mult):
    # q_ref:  (TB, Nq, E)   k_ref/v_ref: (TB, Nk, E)
    # wq/wk:  (E, H*K)      bq/bk: (1, H*K)
    # wv:     (E, H*Dv)     bv:    (1, H*Dv)
    # wo:     (H*Dv, E)     bo:    (1, E)
    # out_ref:(TB, Nq, E)
    TB, Nq, E = q_ref.shape
    Nk = k_ref.shape[1]
    Eo = out_ref.shape[-1]

    q_in = q_ref[...].reshape(TB * Nq, E)
    k_in = k_ref[...].reshape(TB * Nk, E)
    v_in = v_ref[...].reshape(TB * Nk, E)

    # Batched projections: fold (TB, N) into the MXU M dimension.
    qp = jnp.dot(q_in, wq_ref[...], preferred_element_type=jnp.float32) + bq_ref[...]
    kp = jnp.dot(k_in, wk_ref[...], preferred_element_type=jnp.float32) + bk_ref[...]
    vp = jnp.dot(v_in, wv_ref[...], preferred_element_type=jnp.float32) + bv_ref[...]

    wo = wo_ref[...]                                    # (H*Dv, E)
    out_acc = jnp.zeros((TB * Nq, Eo), jnp.float32) + bo_ref[...]

    for h in range(num_heads):                          # static, small head count
        qh = qp[:, h * key_size:(h + 1) * key_size].reshape(TB, Nq, key_size)
        kh = kp[:, h * key_size:(h + 1) * key_size].reshape(TB, Nk, key_size)
        vh = vp[:, h * value_size:(h + 1) * value_size].reshape(TB, Nk, value_size)

        # torch: attention = matmul(Q, K^T) / scale, scale = 1/sqrt(key_size)
        s = jnp.einsum('bqk,bnk->bqn', qh, kh,
                       preferred_element_type=jnp.float32) * score_mult  # (TB,Nq,Nk)

        # softmax over the key axis (lane axis), in f32
        m = jnp.max(s, axis=-1, keepdims=True)
        p = jnp.exp(s - m)
        denom = jnp.sum(p, axis=-1, keepdims=True)
        probs = p * pl.reciprocal(denom, approx=False)

        ctx = jnp.einsum('bqn,bnd->bqd', probs, vh,
                         preferred_element_type=jnp.float32)             # (TB,Nq,Dv)
        ctx_flat = ctx.reshape(TB * Nq, value_size)

        # Output projection accumulated per head: (TB*Nq, Dv) @ (Dv, E)
        out_acc = out_acc + jnp.dot(
            ctx_flat, wo[h * value_size:(h + 1) * value_size, :],
            preferred_element_type=jnp.float32)

    out_ref[...] = out_acc.reshape(TB, Nq, Eo).astype(out_ref.dtype)


def mha_attention(queries, keys, values, params, *,
                  num_heads, key_size, value_size, block_b=None):
    """queries/keys/values: (B, N, out_size) f32. Returns (B, Nq, out_size)."""
    B, Nq, E = queries.shape
    Nk = keys.shape[1]
    hk = num_heads * key_size
    hv = num_heads * value_size

    if block_b is None:
        # Batch several batch elements per grid step, but keep grid length >= 2
        # so the two v7x TensorCores can split the parallel batch axis.
        block_b = B // 2 if (B >= 2 and B % 2 == 0) else 1
    assert B % block_b == 0, "batch must be divisible by block_b"
    grid_b = B // block_b

    # torch: attention / self.scale  with  self.scale = 1/sqrt(key_size)
    score_mult = 1.0 / (1.0 / math.sqrt(key_size))

    kernel = functools.partial(
        _mha_kernel, num_heads=num_heads, key_size=key_size,
        value_size=value_size, score_mult=score_mult)

    flops = int(2 * B * Nq * E * hk + 2 * B * Nk * E * hk + 2 * B * Nk * E * hv
                + 2 * B * num_heads * Nq * Nk * key_size
                + 2 * B * num_heads * Nq * Nk * value_size
                + 2 * B * Nq * hv * E)
    transcendentals = int(B * num_heads * Nq * Nk)
    bytes_accessed = int(4 * (queries.size + keys.size + values.size
                              + 2 * E * hk + E * hv + hv * E
                              + 2 * hk + hv + E + B * Nq * E))

    out = pl.pallas_call(
        kernel,
        out_shape=jax.ShapeDtypeStruct((B, Nq, E), jnp.float32),
        grid_spec=pltpu.PrefetchScalarGridSpec(
            num_scalar_prefetch=0,
            grid=(grid_b,),
            in_specs=[
                pl.BlockSpec((block_b, Nq, E), lambda b: (b, 0, 0)),  # queries
                pl.BlockSpec((block_b, Nk, E), lambda b: (b, 0, 0)),  # keys
                pl.BlockSpec((block_b, Nk, E), lambda b: (b, 0, 0)),  # values
                pl.BlockSpec((E, hk), lambda b: (0, 0)),              # Wq
                pl.BlockSpec((1, hk), lambda b: (0, 0)),              # bq
                pl.BlockSpec((E, hk), lambda b: (0, 0)),              # Wk
                pl.BlockSpec((1, hk), lambda b: (0, 0)),              # bk
                pl.BlockSpec((E, hv), lambda b: (0, 0)),              # Wv
                pl.BlockSpec((1, hv), lambda b: (0, 0)),              # bv
                pl.BlockSpec((hv, E), lambda b: (0, 0)),              # Wo
                pl.BlockSpec((1, E), lambda b: (0, 0)),               # bo
            ],
            out_specs=pl.BlockSpec((block_b, Nq, E), lambda b: (b, 0, 0)),
        ),
        compiler_params=pltpu.CompilerParams(
            dimension_semantics=("parallel",)),
        cost_estimate=pl.CostEstimate(
            flops=flops, transcendentals=transcendentals,
            bytes_accessed=bytes_accessed),
    )(queries, keys, values,
      params["wq"], params["bq"].reshape(1, hk),
      params["wk"], params["bk"].reshape(1, hk),
      params["wv"], params["bv"].reshape(1, hv),
      params["wo"], params["bo"].reshape(1, E))
    return out
    # TODO(synk): optional attention_mask / attention_weights paths of
    # process_masks_and_weights are not implemented (default None path only).


def _reference(queries, keys, values, params, *, num_heads, key_size, value_size):
    """Pure-JAX mirror of the PyTorch forward (mask/weights = None)."""
    B, Nq, _ = queries.shape
    Nk = keys.shape[1]
    scale = 1.0 / math.sqrt(key_size)
    q = queries @ params["wq"] + params["bq"]
    k = keys @ params["wk"] + params["bk"]
    v = values @ params["wv"] + params["bv"]
    q = q.reshape(B, Nq, num_heads, key_size).transpose(0, 2, 1, 3)      # (B,H,Nq,K)
    k = k.reshape(B, Nk, num_heads, key_size).transpose(0, 2, 3, 1)      # (B,H,K,Nk)
    v = v.reshape(B, Nk, num_heads, value_size).transpose(0, 2, 1, 3)    # (B,H,Nk,Dv)
    attn = jnp.matmul(q, k) / scale
    attn = jax.nn.softmax(attn, axis=-1)
    out = jnp.matmul(attn, v)                                            # (B,H,Nq,Dv)
    out = out.transpose(0, 2, 1, 3).reshape(B, Nq, num_heads * value_size)
    return out @ params["wo"] + params["bo"]


def _init_params(key, out_size, key_size, value_size, num_heads):
    hk = num_heads * key_size
    hv = num_heads * value_size
    ks = jax.random.split(key, 5)

    def xavier_uniform(k, fan_in, fan_out):
        bound = math.sqrt(6.0 / (fan_in + fan_out))
        return jax.random.uniform(k, (fan_in, fan_out), jnp.float32, -bound, bound)

    def xavier_normal(k, fan_in, fan_out):
        std = math.sqrt(2.0 / (fan_in + fan_out))
        return std * jax.random.normal(k, (fan_in, fan_out), jnp.float32)

    bo_bound = 1.0 / math.sqrt(hv)
    return {
        "wq": xavier_uniform(ks[0], out_size, hk),
        "bq": jnp.zeros((hk,), jnp.float32),
        "wk": xavier_uniform(ks[1], out_size, hk),
        "bk": jnp.zeros((hk,), jnp.float32),
        "wv": xavier_normal(ks[2], out_size, hv),
        "bv": jnp.zeros((hv,), jnp.float32),
        "wo": xavier_uniform(ks[3], hv, out_size),
        "bo": jax.random.uniform(ks[4], (out_size,), jnp.float32, -bo_bound, bo_bound),
    }


if __name__ == "__main__":
    B, seq = 4, 8
    out_size, key_size, value_size, num_heads = 32, 8, 8, 4

    root = jax.random.PRNGKey(0)
    kq, kk, kv, kp = jax.random.split(root, 4)
    queries = jax.random.normal(kq, (B, seq, out_size), jnp.float32)
    keys = jax.random.normal(kk, (B, seq, out_size), jnp.float32)
    values = jax.random.normal(kv, (B, seq, out_size), jnp.float32)
    params = _init_params(kp, out_size, key_size, value_size, num_heads)

    out = mha_attention(queries, keys, values, params,
                        num_heads=num_heads, key_size=key_size,
                        value_size=value_size, block_b=2)
    jax.block_until_ready(out)

    ref = _reference(queries, keys, values, params, num_heads=num_heads,
                     key_size=key_size, value_size=value_size)
    assert out.shape == (B, seq, out_size)
    assert jnp.allclose(out, ref, atol=1e-4, rtol=1e-4), \
        float(jnp.max(jnp.abs(out - ref)))

    print("KERNEL_OK")
</pallas_src>

<mosaic_0001>
module attributes {stable_mosaic.version = 11 : i64} {
  func.func @_mha_kernel(%arg0: i32, %arg1: memref<2x8x32xf32, #tpu.memory_space<vmem>>, %arg2: memref<2x8x32xf32, #tpu.memory_space<vmem>>, %arg3: memref<2x8x32xf32, #tpu.memory_space<vmem>>, %arg4: memref<32x32xf32, #tpu.memory_space<vmem>>, %arg5: memref<1x32xf32, #tpu.memory_space<vmem>>, %arg6: memref<32x32xf32, #tpu.memory_space<vmem>>, %arg7: memref<1x32xf32, #tpu.memory_space<vmem>>, %arg8: memref<32x32xf32, #tpu.memory_space<vmem>>, %arg9: memref<1x32xf32, #tpu.memory_space<vmem>>, %arg10: memref<32x32xf32, #tpu.memory_space<vmem>>, %arg11: memref<1x32xf32, #tpu.memory_space<vmem>>, %arg12: memref<2x8x32xf32, #tpu.memory_space<vmem>>) attributes {dimension_semantics = [#tpu.dimension_semantics<parallel>], iteration_bounds = array<i64: 2>, scalar_prefetch = 0 : i64, scratch_operands = 0 : i64, tpu.core_type = #tpu.core_type<tc>, window_params = [{transform_indices = @transform_0, window_bounds = array<i64: 2, 8, 32>}, {transform_indices = @transform_1, window_bounds = array<i64: 2, 8, 32>}, {transform_indices = @transform_2, window_bounds = array<i64: 2, 8, 32>}, {pipeline_mode = #tpu.pipeline_mode<synchronous>, transform_indices = @transform_3, window_bounds = array<i64: 32, 32>}, {pipeline_mode = #tpu.pipeline_mode<synchronous>, transform_indices = @transform_4, window_bounds = array<i64: 1, 32>}, {pipeline_mode = #tpu.pipeline_mode<synchronous>, transform_indices = @transform_5, window_bounds = array<i64: 32, 32>}, {pipeline_mode = #tpu.pipeline_mode<synchronous>, transform_indices = @transform_6, window_bounds = array<i64: 1, 32>}, {pipeline_mode = #tpu.pipeline_mode<synchronous>, transform_indices = @transform_7, window_bounds = array<i64: 32, 32>}, {pipeline_mode = #tpu.pipeline_mode<synchronous>, transform_indices = @transform_8, window_bounds = array<i64: 1, 32>}, {pipeline_mode = #tpu.pipeline_mode<synchronous>, transform_indices = @transform_9, window_bounds = array<i64: 32, 32>}, {pipeline_mode = #tpu.pipeline_mode<synchronous>, transform_indices = @transform_10, window_bounds = array<i64: 1, 32>}, {transform_indices = @transform_11, window_bounds = array<i64: 2, 8, 32>}]} {
    %c0 = arith.constant 0 : index
    %c0_0 = arith.constant 0 : index
    %c0_1 = arith.constant 0 : index
    %0 = vector.load %arg1[%c0, %c0_0, %c0_1] : memref<2x8x32xf32, #tpu.memory_space<vmem>>, vector<2x8x32xf32>
    %1 = vector.shape_cast %0 : vector<2x8x32xf32> to vector<16x32xf32>
    %c0_2 = arith.constant 0 : index
    %c0_3 = arith.constant 0 : index
    %c0_4 = arith.constant 0 : index
    %2 = vector.load %arg2[%c0_2, %c0_3, %c0_4] : memref<2x8x32xf32, #tpu.memory_space<vmem>>, vector<2x8x32xf32>
    %3 = vector.shape_cast %2 : vector<2x8x32xf32> to vector<16x32xf32>
    %c0_5 = arith.constant 0 : index
    %c0_6 = arith.constant 0 : index
    %c0_7 = arith.constant 0 : index
    %4 = vector.load %arg3[%c0_5, %c0_6, %c0_7] : memref<2x8x32xf32, #tpu.memory_space<vmem>>, vector<2x8x32xf32>
    %5 = vector.shape_cast %4 : vector<2x8x32xf32> to vector<16x32xf32>
    %c0_8 = arith.constant 0 : index
    %c0_9 = arith.constant 0 : index
    %6 = vector.load %arg4[%c0_8, %c0_9] : memref<32x32xf32, #tpu.memory_space<vmem>>, vector<32x32xf32>
    %cst = arith.constant dense<0.000000e+00> : vector<16x32xf32>
    %7 = tpu.matmul %1, %6, %cst {dimension_numbers = #tpu.dot_dimension_numbers<[1], [0], [0], [1], [0, 0, 1, 1], [], []>} : vector<16x32xf32>, vector<32x32xf32>, vector<16x32xf32> -> vector<16x32xf32>
    %c0_10 = arith.constant 0 : index
    %c0_11 = arith.constant 0 : index
    %8 = vector.load %arg5[%c0_10, %c0_11] : memref<1x32xf32, #tpu.memory_space<vmem>>, vector<1x32xf32>
    %9 = vector.broadcast %8 : vector<1x32xf32> to vector<16x32xf32>
    %10 = arith.addf %7, %9 : vector<16x32xf32>
    %c0_12 = arith.constant 0 : index
    %c0_13 = arith.constant 0 : index
    %11 = vector.load %arg6[%c0_12, %c0_13] : memref<32x32xf32, #tpu.memory_space<vmem>>, vector<32x32xf32>
    %cst_14 = arith.constant dense<0.000000e+00> : vector<16x32xf32>
    %12 = tpu.matmul %3, %11, %cst_14 {dimension_numbers = #tpu.dot_dimension_numbers<[1], [0], [0], [1], [0, 0, 1, 1], [], []>} : vector<16x32xf32>, vector<32x32xf32>, vector<16x32xf32> -> vector<16x32xf32>
    %c0_15 = arith.constant 0 : index
    %c0_16 = arith.constant 0 : index
    %13 = vector.load %arg7[%c0_15, %c0_16] : memref<1x32xf32, #tpu.memory_space<vmem>>, vector<1x32xf32>
    %14 = vector.broadcast %13 : vector<1x32xf32> to vector<16x32xf32>
    %15 = arith.addf %12, %14 : vector<16x32xf32>
    %c0_17 = arith.constant 0 : index
    %c0_18 = arith.constant 0 : index
    %16 = vector.load %arg8[%c0_17, %c0_18] : memref<32x32xf32, #tpu.memory_space<vmem>>, vector<32x32xf32>
    %cst_19 = arith.constant dense<0.000000e+00> : vector<16x32xf32>
    %17 = tpu.matmul %5, %16, %cst_19 {dimension_numbers = #tpu.dot_dimension_numbers<[1], [0], [0], [1], [0, 0, 1, 1], [], []>} : vector<16x32xf32>, vector<32x32xf32>, vector<16x32xf32> -> vector<16x32xf32>
    %c0_20 = arith.constant 0 : index
    %c0_21 = arith.constant 0 : index
    %18 = vector.load %arg9[%c0_20, %c0_21] : memref<1x32xf32, #tpu.memory_space<vmem>>, vector<1x32xf32>
    %19 = vector.broadcast %18 : vector<1x32xf32> to vector<16x32xf32>
    %20 = arith.addf %17, %19 : vector<16x32xf32>
    %c0_22 = arith.constant 0 : index
    %c0_23 = arith.constant 0 : index
    %21 = vector.load %arg10[%c0_22, %c0_23] : memref<32x32xf32, #tpu.memory_space<vmem>>, vector<32x32xf32>
    %cst_24 = arith.constant 0.000000e+00 : f32
    %22 = vector.broadcast %cst_24 : f32 to vector<16x32xf32>
    %c0_25 = arith.constant 0 : index
    %c0_26 = arith.constant 0 : index
    %23 = vector.load %arg11[%c0_25, %c0_26] : memref<1x32xf32, #tpu.memory_space<vmem>>, vector<1x32xf32>
    %24 = vector.broadcast %23 : vector<1x32xf32> to vector<16x32xf32>
    %25 = arith.addf %22, %24 : vector<16x32xf32>
    %26 = vector.extract_strided_slice %10 {offsets = [0, 0], sizes = [16, 8], strides = [1, 1]} : vector<16x32xf32> to vector<16x8xf32>
    %27 = vector.shape_cast %26 : vector<16x8xf32> to vector<2x8x8xf32>
    %28 = vector.extract_strided_slice %15 {offsets = [0, 0], sizes = [16, 8], strides = [1, 1]} : vector<16x32xf32> to vector<16x8xf32>
    %29 = vector.shape_cast %28 : vector<16x8xf32> to vector<2x8x8xf32>
    %30 = vector.extract_strided_slice %20 {offsets = [0, 0], sizes = [16, 8], strides = [1, 1]} : vector<16x32xf32> to vector<16x8xf32>
    %31 = vector.shape_cast %30 : vector<16x8xf32> to vector<2x8x8xf32>
    "tpu.trace_start"() <{level = 10 : i32, message = "bqk,bnk->bqn"}> : () -> ()
    %cst_27 = arith.constant dense<0.000000e+00> : vector<2x8x8xf32>
    %32 = tpu.matmul %27, %29, %cst_27 {dimension_numbers = #tpu.dot_dimension_numbers<[2], [2], [1], [1], [0, 0, 0, 1, 1, 1], [0], [0]>} : vector<2x8x8xf32>, vector<2x8x8xf32>, vector<2x8x8xf32> -> vector<2x8x8xf32>
    "tpu.trace_stop"() : () -> ()
    %cst_28 = arith.constant 2.82842708 : f32
    %33 = vector.broadcast %cst_28 : f32 to vector<2x8x8xf32>
    %34 = arith.mulf %32, %33 : vector<2x8x8xf32>
    %cst_29 = arith.constant dense<0xFF800000> : vector<2x8xf32>
    %35 = vector.multi_reduction <maximumf>, %34, %cst_29 [2] : vector<2x8x8xf32> to vector<2x8xf32>
    %36 = vector.shape_cast %35 : vector<2x8xf32> to vector<2x8x1xf32>
    %37 = vector.broadcast %36 : vector<2x8x1xf32> to vector<2x8x8xf32>
    %38 = arith.subf %34, %37 : vector<2x8x8xf32>
    %39 = math.exp %38 : vector<2x8x8xf32>
    %cst_30 = arith.constant dense<0.000000e+00> : vector<2x8xf32>
    %40 = vector.multi_reduction <add>, %39, %cst_30 [2] : vector<2x8x8xf32> to vector<2x8xf32>
    %41 = vector.shape_cast %40 : vector<2x8xf32> to vector<2x8x1xf32>
    %42 = tpu.reciprocal %41 : vector<2x8x1xf32> -> vector<2x8x1xf32>
    %43 = vector.broadcast %42 : vector<2x8x1xf32> to vector<2x8x8xf32>
    %44 = arith.mulf %39, %43 : vector<2x8x8xf32>
    "tpu.trace_start"() <{level = 10 : i32, message = "bqn,bnd->bqd"}> : () -> ()
    %cst_31 = arith.constant dense<0.000000e+00> : vector<2x8x8xf32>
    %45 = tpu.matmul %44, %31, %cst_31 {dimension_numbers = #tpu.dot_dimension_numbers<[2], [1], [1], [2], [0, 0, 0, 1, 1, 2], [0], [0]>} : vector<2x8x8xf32>, vector<2x8x8xf32>, vector<2x8x8xf32> -> vector<2x8x8xf32>
    "tpu.trace_stop"() : () -> ()
    %46 = vector.shape_cast %45 : vector<2x8x8xf32> to vector<16x8xf32>
    %47 = vector.extract_strided_slice %21 {offsets = [0, 0], sizes = [8, 32], strides = [1, 1]} : vector<32x32xf32> to vector<8x32xf32>
    %cst_32 = arith.constant dense<0.000000e+00> : vector<16x32xf32>
    %48 = tpu.matmul %46, %47, %cst_32 {dimension_numbers = #tpu.dot_dimension_numbers<[1], [0], [0], [1], [0, 0, 1, 1], [], []>} : vector<16x8xf32>, vector<8x32xf32>, vector<16x32xf32> -> vector<16x32xf32>
    %49 = arith.addf %25, %48 : vector<16x32xf32>
    %50 = vector.extract_strided_slice %10 {offsets = [0, 8], sizes = [16, 8], strides = [1, 1]} : vector<16x32xf32> to vector<16x8xf32>
    %51 = vector.shape_cast %50 : vector<16x8xf32> to vector<2x8x8xf32>
    %52 = vector.extract_strided_slice %15 {offsets = [0, 8], sizes = [16, 8], strides = [1, 1]} : vector<16x32xf32> to vector<16x8xf32>
    %53 = vector.shape_cast %52 : vector<16x8xf32> to vector<2x8x8xf32>
    %54 = vector.extract_strided_slice %20 {offsets = [0, 8], sizes = [16, 8], strides = [1, 1]} : vector<16x32xf32> to vector<16x8xf32>
    %55 = vector.shape_cast %54 : vector<16x8xf32> to vector<2x8x8xf32>
    "tpu.trace_start"() <{level = 10 : i32, message = "bqk,bnk->bqn"}> : () -> ()
    %cst_33 = arith.constant dense<0.000000e+00> : vector<2x8x8xf32>
    %56 = tpu.matmul %51, %53, %cst_33 {dimension_numbers = #tpu.dot_dimension_numbers<[2], [2], [1], [1], [0, 0, 0, 1, 1, 1], [0], [0]>} : vector<2x8x8xf32>, vector<2x8x8xf32>, vector<2x8x8xf32> -> vector<2x8x8xf32>
    "tpu.trace_stop"() : () -> ()
    %cst_34 = arith.constant 2.82842708 : f32
    %57 = vector.broadcast %cst_34 : f32 to vector<2x8x8xf32>
    %58 = arith.mulf %56, %57 : vector<2x8x8xf32>
    %cst_35 = arith.constant dense<0xFF800000> : vector<2x8xf32>
    %59 = vector.multi_reduction <maximumf>, %58, %cst_35 [2] : vector<2x8x8xf32> to vector<2x8xf32>
    %60 = vector.shape_cast %59 : vector<2x8xf32> to vector<2x8x1xf32>
    %61 = vector.broadcast %60 : vector<2x8x1xf32> to vector<2x8x8xf32>
    %62 = arith.subf %58, %61 : vector<2x8x8xf32>
    %63 = math.exp %62 : vector<2x8x8xf32>
    %cst_36 = arith.constant dense<0.000000e+00> : vector<2x8xf32>
    %64 = vector.multi_reduction <add>, %63, %cst_36 [2] : vector<2x8x8xf32> to vector<2x8xf32>
    %65 = vector.shape_cast %64 : vector<2x8xf32> to vector<2x8x1xf32>
    %66 = tpu.reciprocal %65 : vector<2x8x1xf32> -> vector<2x8x1xf32>
    %67 = vector.broadcast %66 : vector<2x8x1xf32> to vector<2x8x8xf32>
    %68 = arith.mulf %63, %67 : vector<2x8x8xf32>
    "tpu.trace_start"() <{level = 10 : i32, message = "bqn,bnd->bqd"}> : () -> ()
    %cst_37 = arith.constant dense<0.000000e+00> : vector<2x8x8xf32>
    %69 = tpu.matmul %68, %55, %cst_37 {dimension_numbers = #tpu.dot_dimension_numbers<[2], [1], [1], [2], [0, 0, 0, 1, 1, 2], [0], [0]>} : vector<2x8x8xf32>, vector<2x8x8xf32>, vector<2x8x8xf32> -> vector<2x8x8xf32>
    "tpu.trace_stop"() : () -> ()
    %70 = vector.shape_cast %69 : vector<2x8x8xf32> to vector<16x8xf32>
    %71 = vector.extract_strided_slice %21 {offsets = [8, 0], sizes = [8, 32], strides = [1, 1]} : vector<32x32xf32> to vector<8x32xf32>
    %cst_38 = arith.constant dense<0.000000e+00> : vector<16x32xf32>
    %72 = tpu.matmul %70, %71, %cst_38 {dimension_numbers = #tpu.dot_dimension_numbers<[1], [0], [0], [1], [0, 0, 1, 1], [], []>} : vector<16x8xf32>, vector<8x32xf32>, vector<16x32xf32> -> vector<16x32xf32>
    %73 = arith.addf %49, %72 : vector<16x32xf32>
    %74 = vector.extract_strided_slice %10 {offsets = [0, 16], sizes = [16, 8], strides = [1, 1]} : vector<16x32xf32> to vector<16x8xf32>
    %75 = vector.shape_cast %74 : vector<16x8xf32> to vector<2x8x8xf32>
    %76 = vector.extract_strided_slice %15 {offsets = [0, 16], sizes = [16, 8], strides = [1, 1]} : vector<16x32xf32> to vector<16x8xf32>
    %77 = vector.shape_cast %76 : vector<16x8xf32> to vector<2x8x8xf32>
    %78 = vector.extract_strided_slice %20 {offsets = [0, 16], sizes = [16, 8], strides = [1, 1]} : vector<16x32xf32> to vector<16x8xf32>
    %79 = vector.shape_cast %78 : vector<16x8xf32> to vector<2x8x8xf32>
    "tpu.trace_start"() <{level = 10 : i32, message = "bqk,bnk->bqn"}> : () -> ()
    %cst_39 = arith.constant dense<0.000000e+00> : vector<2x8x8xf32>
    %80 = tpu.matmul %75, %77, %cst_39 {dimension_numbers = #tpu.dot_dimension_numbers<[2], [2], [1], [1], [0, 0, 0, 1, 1, 1], [0], [0]>} : vector<2x8x8xf32>, vector<2x8x8xf32>, vector<2x8x8xf32> -> vector<2x8x8xf32>
    "tpu.trace_stop"() : () -> ()
    %cst_40 = arith.constant 2.82842708 : f32
    %81 = vector.broadcast %cst_40 : f32 to vector<2x8x8xf32>
    %82 = arith.mulf %80, %81 : vector<2x8x8xf32>
    %cst_41 = arith.constant dense<0xFF800000> : vector<2x8xf32>
    %83 = vector.multi_reduction <maximumf>, %82, %cst_41 [2] : vector<2x8x8xf32> to vector<2x8xf32>
    %84 = vector.shape_cast %83 : vector<2x8xf32> to vector<2x8x1xf32>
    %85 = vector.broadcast %84 : vector<2x8x1xf32> to vector<2x8x8xf32>
    %86 = arith.subf %82, %85 : vector<2x8x8xf32>
    %87 = math.exp %86 : vector<2x8x8xf32>
    %cst_42 = arith.constant dense<0.000000e+00> : vector<2x8xf32>
    %88 = vector.multi_reduction <add>, %87, %cst_42 [2] : vector<2x8x8xf32> to vector<2x8xf32>
    %89 = vector.shape_cast %88 : vector<2x8xf32> to vector<2x8x1xf32>
    %90 = tpu.reciprocal %89 : vector<2x8x1xf32> -> vector<2x8x1xf32>
    %91 = vector.broadcast %90 : vector<2x8x1xf32> to vector<2x8x8xf32>
    %92 = arith.mulf %87, %91 : vector<2x8x8xf32>
    "tpu.trace_start"() <{level = 10 : i32, message = "bqn,bnd->bqd"}> : () -> ()
    %cst_43 = arith.constant dense<0.000000e+00> : vector<2x8x8xf32>
    %93 = tpu.matmul %92, %79, %cst_43 {dimension_numbers = #tpu.dot_dimension_numbers<[2], [1], [1], [2], [0, 0, 0, 1, 1, 2], [0], [0]>} : vector<2x8x8xf32>, vector<2x8x8xf32>, vector<2x8x8xf32> -> vector<2x8x8xf32>
    "tpu.trace_stop"() : () -> ()
    %94 = vector.shape_cast %93 : vector<2x8x8xf32> to vector<16x8xf32>
    %95 = vector.extract_strided_slice %21 {offsets = [16, 0], sizes = [8, 32], strides = [1, 1]} : vector<32x32xf32> to vector<8x32xf32>
    %cst_44 = arith.constant dense<0.000000e+00> : vector<16x32xf32>
    %96 = tpu.matmul %94, %95, %cst_44 {dimension_numbers = #tpu.dot_dimension_numbers<[1], [0], [0], [1], [0, 0, 1, 1], [], []>} : vector<16x8xf32>, vector<8x32xf32>, vector<16x32xf32> -> vector<16x32xf32>
    %97 = arith.addf %73, %96 : vector<16x32xf32>
    %98 = vector.extract_strided_slice %10 {offsets = [0, 24], sizes = [16, 8], strides = [1, 1]} : vector<16x32xf32> to vector<16x8xf32>
    %99 = vector.shape_cast %98 : vector<16x8xf32> to vector<2x8x8xf32>
    %100 = vector.extract_strided_slice %15 {offsets = [0, 24], sizes = [16, 8], strides = [1, 1]} : vector<16x32xf32> to vector<16x8xf32>
    %101 = vector.shape_cast %100 : vector<16x8xf32> to vector<2x8x8xf32>
    %102 = vector.extract_strided_slice %20 {offsets = [0, 24], sizes = [16, 8], strides = [1, 1]} : vector<16x32xf32> to vector<16x8xf32>
    %103 = vector.shape_cast %102 : vector<16x8xf32> to vector<2x8x8xf32>
    "tpu.trace_start"() <{level = 10 : i32, message = "bqk,bnk->bqn"}> : () -> ()
    %cst_45 = arith.constant dense<0.000000e+00> : vector<2x8x8xf32>
    %104 = tpu.matmul %99, %101, %cst_45 {dimension_numbers = #tpu.dot_dimension_numbers<[2], [2], [1], [1], [0, 0, 0, 1, 1, 1], [0], [0]>} : vector<2x8x8xf32>, vector<2x8x8xf32>, vector<2x8x8xf32> -> vector<2x8x8xf32>
    "tpu.trace_stop"() : () -> ()
    %cst_46 = arith.constant 2.82842708 : f32
    %105 = vector.broadcast %cst_46 : f32 to vector<2x8x8xf32>
    %106 = arith.mulf %104, %105 : vector<2x8x8xf32>
    %cst_47 = arith.constant dense<0xFF800000> : vector<2x8xf32>
    %107 = vector.multi_reduction <maximumf>, %106, %cst_47 [2] : vector<2x8x8xf32> to vector<2x8xf32>
    %108 = vector.shape_cast %107 : vector<2x8xf32> to vector<2x8x1xf32>
    %109 = vector.broadcast %108 : vector<2x8x1xf32> to vector<2x8x8xf32>
    %110 = arith.subf %106, %109 : vector<2x8x8xf32>
    %111 = math.exp %110 : vector<2x8x8xf32>
    %cst_48 = arith.constant dense<0.000000e+00> : vector<2x8xf32>
    %112 = vector.multi_reduction <add>, %111, %cst_48 [2] : vector<2x8x8xf32> to vector<2x8xf32>
    %113 = vector.shape_cast %112 : vector<2x8xf32> to vector<2x8x1xf32>
    %114 = tpu.reciprocal %113 : vector<2x8x1xf32> -> vector<2x8x1xf32>
    %115 = vector.broadcast %114 : vector<2x8x1xf32> to vector<2x8x8xf32>
    %116 = arith.mulf %111, %115 : vector<2x8x8xf32>
    "tpu.trace_start"() <{level = 10 : i32, message = "bqn,bnd->bqd"}> : () -> ()
    %cst_49 = arith.constant dense<0.000000e+00> : vector<2x8x8xf32>
    %117 = tpu.matmul %116, %103, %cst_49 {dimension_numbers = #tpu.dot_dimension_numbers<[2], [1], [1], [2], [0, 0, 0, 1, 1, 2], [0], [0]>} : vector<2x8x8xf32>, vector<2x8x8xf32>, vector<2x8x8xf32> -> vector<2x8x8xf32>
    "tpu.trace_stop"() : () -> ()
    %118 = vector.shape_cast %117 : vector<2x8x8xf32> to vector<16x8xf32>
    %119 = vector.extract_strided_slice %21 {offsets = [24, 0], sizes = [8, 32], strides = [1, 1]} : vector<32x32xf32> to vector<8x32xf32>
    %cst_50 = arith.constant dense<0.000000e+00> : vector<16x32xf32>
    %120 = tpu.matmul %118, %119, %cst_50 {dimension_numbers = #tpu.dot_dimension_numbers<[1], [0], [0], [1], [0, 0, 1, 1], [], []>} : vector<16x8xf32>, vector<8x32xf32>, vector<16x32xf32> -> vector<16x32xf32>
    %121 = arith.addf %97, %120 : vector<16x32xf32>
    %122 = vector.shape_cast %121 : vector<16x32xf32> to vector<2x8x32xf32>
    %c0_51 = arith.constant 0 : index
    %c0_52 = arith.constant 0 : index
    %c0_53 = arith.constant 0 : index
    %123 = vector.load %arg12[%c0_51, %c0_52, %c0_53] : memref<2x8x32xf32, #tpu.memory_space<vmem>>, vector<2x8x32xf32>
    tpu.vector_store %arg12[%c0_51, %c0_52, %c0_53], %122 {strides = array<i32>} : memref<2x8x32xf32, #tpu.memory_space<vmem>>, vector<2x8x32xf32>,
    return
  }
  func.func @transform_0(%arg0: i32) -> (i32, i32, i32) {
    %c0_i32 = arith.constant 0 : i32
    %c0_i32_0 = arith.constant 0 : i32
    %c0_i32_1 = arith.constant 0 : i32
    return %arg0, %c0_i32, %c0_i32_0 : i32, i32, i32
  }
  func.func @transform_1(%arg0: i32) -> (i32, i32, i32) {
    %c0_i32 = arith.constant 0 : i32
    %c0_i32_0 = arith.constant 0 : i32
    %c0_i32_1 = arith.constant 0 : i32
    return %arg0, %c0_i32, %c0_i32_0 : i32, i32, i32
  }
  func.func @transform_2(%arg0: i32) -> (i32, i32, i32) {
    %c0_i32 = arith.constant 0 : i32
    %c0_i32_0 = arith.constant 0 : i32
    %c0_i32_1 = arith.constant 0 : i32
    return %arg0, %c0_i32, %c0_i32_0 : i32, i32, i32
  }
  func.func @transform_3(%arg0: i32) -> (i32, i32) {
    %c0_i32 = arith.constant 0 : i32
    %c0_i32_0 = arith.constant 0 : i32
    %c0_i32_1 = arith.constant 0 : i32
    return %c0_i32, %c0_i32_0 : i32, i32
  }
  func.func @transform_4(%arg0: i32) -> (i32, i32) {
    %c0_i32 = arith.constant 0 : i32
    %c0_i32_0 = arith.constant 0 : i32
    %c0_i32_1 = arith.constant 0 : i32
    return %c0_i32, %c0_i32_0 : i32, i32
  }
  func.func @transform_5(%arg0: i32) -> (i32, i32) {
    %c0_i32 = arith.constant 0 : i32
    %c0_i32_0 = arith.constant 0 : i32
    %c0_i32_1 = arith.constant 0 : i32
    return %c0_i32, %c0_i32_0 : i32, i32
  }
  func.func @transform_6(%arg0: i32) -> (i32, i32) {
    %c0_i32 = arith.constant 0 : i32
    %c0_i32_0 = arith.constant 0 : i32
    %c0_i32_1 = arith.constant 0 : i32
    return %c0_i32, %c0_i32_0 : i32, i32
  }
  func.func @transform_7(%arg0: i32) -> (i32, i32) {
    %c0_i32 = arith.constant 0 : i32
    %c0_i32_0 = arith.constant 0 : i32
    %c0_i32_1 = arith.constant 0 : i32
    return %c0_i32, %c0_i32_0 : i32, i32
  }
  func.func @transform_8(%arg0: i32) -> (i32, i32) {
    %c0_i32 = arith.constant 0 : i32
    %c0_i32_0 = arith.constant 0 : i32
    %c0_i32_1 = arith.constant 0 : i32
    return %c0_i32, %c0_i32_0 : i32, i32
  }
  func.func @transform_9(%arg0: i32) -> (i32, i32) {
    %c0_i32 = arith.constant 0 : i32
    %c0_i32_0 = arith.constant 0 : i32
    %c0_i32_1 = arith.constant 0 : i32
    return %c0_i32, %c0_i32_0 : i32, i32
  }
  func.func @transform_10(%arg0: i32) -> (i32, i32) {
    %c0_i32 = arith.constant 0 : i32
    %c0_i32_0 = arith.constant 0 : i32
    %c0_i32_1 = arith.constant 0 : i32
    return %c0_i32, %c0_i32_0 : i32, i32
  }
  func.func @transform_11(%arg0: i32) -> (i32, i32, i32) {
    %c0_i32 = arith.constant 0 : i32
    %c0_i32_0 = arith.constant 0 : i32
    %c0_i32_1 = arith.constant 0 : i32
    return %arg0, %c0_i32, %c0_i32_0 : i32, i32, i32
  }
}

</mosaic_0001>

<llo_original>
// kernel: tpu_custom_call.1
$region0: #{tpu_custom_call.1}
  #allocation0 [shape = 'u32[]', space=smem, size = 0x4, offset = 0x4, fixed_abs, tag = 'smem constant byte address 0x4 - core index']
  #allocation1 [shape = 'u32[72,128]{1,0:T(1,128)}', space=vmem, size = 0x9000, scoped, tag = 'internal scratch']
  %s0 = inlined_call_operand.hbm [shape: f32[4,8,32], index: 0, kind: input, shape index: {}]
  %s1 = inlined_call_operand.hbm [shape: f32[4,8,32], index: 1, kind: input, shape index: {}]
  %s2 = inlined_call_operand.hbm [shape: f32[4,8,32], index: 2, kind: input, shape index: {}]
  %s3 = inlined_call_operand.hbm [shape: f32[32,32], index: 3, kind: input, shape index: {}]
  %s4 = inlined_call_operand.vmem [shape: f32[1,32], index: 4, kind: input, shape index: {}]
  %s5 = inlined_call_operand.hbm [shape: f32[32,32], index: 5, kind: input, shape index: {}]
  %s6 = inlined_call_operand.vmem [shape: f32[1,32], index: 6, kind: input, shape index: {}]
  %s7 = inlined_call_operand.hbm [shape: f32[32,32], index: 7, kind: input, shape index: {}]
  %s8 = inlined_call_operand.vmem [shape: f32[1,32], index: 8, kind: input, shape index: {}]
  %s9 = inlined_call_operand.hbm [shape: f32[32,32], index: 9, kind: input, shape index: {}]
  %s10 = inlined_call_operand.vmem [shape: f32[1,32], index: 10, kind: input, shape index: {}]
  %s11 = inlined_call_operand.hbm [shape: f32[4,8,32], index: 11, kind: output, shape index: {}]
  %s12 = sld [smem:[#allocation0]]
  $region105: #{tpu_custom_call.1} parent=0
    _
  %s14 = ssub.s32 1, %s12
  %s15 = scalar_select 0, %s14, %s12
  $region1: #{tpu_custom_call.1} parent=0
    #allocation2 [shape = 'u8[16384]{0}', space=vmem, size = 0x4000, scoped, tag = 'input window, operand 0']
    #allocation3 [shape = 's32[2]{0}', space=sflag, size = 0x8, scoped, tag = 'scoped memory for tpu_custom_call.1']
    #allocation4 [shape = 's32[2]{0}', space=sflag, size = 0x8, scoped, tag = 'scoped memory for tpu_custom_call.1']
    #allocation5 [shape = 'u8[16384]{0}', space=vmem, size = 0x4000, scoped, tag = 'input window, operand 1']
    #allocation6 [shape = 's32[2]{0}', space=sflag, size = 0x8, scoped, tag = 'scoped memory for tpu_custom_call.1']
    #allocation7 [shape = 'u8[16384]{0}', space=vmem, size = 0x4000, scoped, tag = 'input window, operand 2']
    #allocation8 [shape = 'u8[16384]{0}', space=vmem, size = 0x4000, scoped, tag = 'input window, operand 3, single buffered']
    #allocation9 [shape = 's32[1]{0}', space=sflag, size = 0x4, scoped, tag = 'scoped memory for tpu_custom_call.1']
    #allocation10 [shape = 'u8[16384]{0}', space=vmem, size = 0x4000, scoped, tag = 'input window, operand 5, single buffered']
    #allocation11 [shape = 'u8[16384]{0}', space=vmem, size = 0x4000, scoped, tag = 'input window, operand 7, single buffered']
    #allocation12 [shape = 's32[1]{0}', space=sflag, size = 0x4, scoped, tag = 'scoped memory for tpu_custom_call.1']
    #allocation13 [shape = 'u8[16384]{0}', space=vmem, size = 0x4000, scoped, tag = 'input window, operand 9, single buffered']
    #allocation14 [shape = 'u8[16384]{0}', space=vmem, size = 0x4000, scoped, tag = 'output window, operand 0']
    %16 = vsyncpa [#allocation3], 0
    %s17 = scalar_lea.sflag [#allocation3], 1
    %18 = vsyncpa %s17, 0
    %19 = vsyncpa [#allocation6], 0
    %s20 = scalar_lea.sflag [#allocation6], 1
    %21 = vsyncpa %s20, 0
    %22 = vsyncpa [#allocation9], 0
    %23 = vsyncpa [#allocation12], 0
    %24 = vsyncpa [#allocation4], 0
    %s25 = scalar_lea.sflag [#allocation4], 1
    %26 = vsyncpa %s25, 0
    loop: start=0, step=1, limit=4
    $region2: #{tpu_custom_call.1} parent=1 // loop_pre_header
      _
    $region3: #{tpu_custom_call.1} parent=1 // loop_header
      %s28 = sphi 0, %s32
      %p29 = scmp.ge.s32.totalorder %s28, 4
      %s38 = sphi 0, %s40
      %s41 = sphi 0, %s38
      %s42 = sphi 0, %s41
      %s58 = sphi 0, %s42
      %s64 = sphi 0, %s66
      %s67 = sphi 0, %s64
      %s68 = sphi 0, %s67
      %s84 = sphi 0, %s68
      %s90 = sphi 0, %s92
      %s93 = sphi 0, %s90
      %s94 = sphi 0, %s93
      %s110 = sphi 0, %s94
      %s114 = sphi 0, %s114
      %s116 = sphi 0, %s114
      %s117 = sphi 0, %s116
      %s131 = sphi 0, %s117
      %s135 = sphi 0, %s135
      %s137 = sphi 0, %s135
      %s138 = sphi 0, %s137
      %s152 = sphi 0, %s138
      %s156 = sphi 0, %s156
      %s158 = sphi 0, %s156
      %s159 = sphi 0, %s158
      %s173 = sphi 0, %s159
      %s177 = sphi 0, %s177
      %s179 = sphi 0, %s177
      %s180 = sphi 0, %s179
      %s194 = sphi 0, %s180
      %s198 = sphi 0, %s198
      %s200 = sphi 0, %s198
      %s201 = sphi 0, %s200
      %s215 = sphi 0, %s201
      %s219 = sphi 0, %s219
      %s221 = sphi 0, %s219
      %s222 = sphi 0, %s221
      %s236 = sphi 0, %s222
      %s240 = sphi 0, %s240
      %s242 = sphi 0, %s240
      %s243 = sphi 0, %s242
      %s257 = sphi 0, %s243
      %s261 = sphi 0, %s261
      %s263 = sphi 0, %s261
      %s264 = sphi 0, %s263
      %s278 = sphi 0, %s264
      %s284 = sphi 0, %s286
      %s287 = sphi 0, %s284
      %s288 = sphi 0, %s287
      %s304 = sphi 0, %s288
    $region4: #{tpu_custom_call.1} parent=1 // loop_header_branch
      %31 = sbr.rel (%p29) target = $region8
    $region5: #{tpu_custom_call.1} parent=1 // loop_body
      %s33 = ssub.s32 %s28, 1
      %s34 = ssub.s32 %s28, 2
      %s35 = sadd.s32 %s28, 1
      %s36 = ssub.s32 %s28, %s35
      %p37 = scmp.eq.s32.totalorder %s36, 0
      %s39 = sadd.s32 %s38, 1
      %s40 = scalar_select %p37, %s38, %s39
      %p43 = pneg %p37
      %p44 = scmp.eq.s32.totalorder %s28, 1
      %p45 = por %p43, %p44
      %p46 = scmp.ne.s32.totalorder %s38, %s41
      %p47 = scmp.eq.s32.totalorder %s28, 0
      %p48 = por %p46, %p47
      %p49 = scmp.ne.s32.totalorder %s38, %s41
      %p50 = scmp.eq.s32.totalorder %s33, 1
      %p51 = por %p49, %p50
      %p52 = scmp.ne.s32.totalorder %s41, %s42
      %p53 = scmp.eq.s32.totalorder %s33, 0
      %p54 = por %p52, %p53
      %p55 = scmp.ne.s32.totalorder %s41, %s42
      %p56 = scmp.eq.s32.totalorder %s34, 1
      %p57 = por %p55, %p56
      %p59 = scmp.ne.s32.totalorder %s42, %s58
      %p60 = scmp.eq.s32.totalorder %s34, 0
      %p61 = por %p59, %p60
      %s62 = ssub.s32 %s28, %s35
      %p63 = scmp.eq.s32.totalorder %s62, 0
      %s65 = sadd.s32 %s64, 1
      %s66 = scalar_select %p63, %s64, %s65
      %p69 = pneg %p63
      %p70 = scmp.eq.s32.totalorder %s28, 1
      %p71 = por %p69, %p70
      %p72 = scmp.ne.s32.totalorder %s64, %s67
      %p73 = scmp.eq.s32.totalorder %s28, 0
      %p74 = por %p72, %p73
      %p75 = scmp.ne.s32.totalorder %s64, %s67
      %p76 = scmp.eq.s32.totalorder %s33, 1
      %p77 = por %p75, %p76
      %p78 = scmp.ne.s32.totalorder %s67, %s68
      %p79 = scmp.eq.s32.totalorder %s33, 0
      %p80 = por %p78, %p79
      %p81 = scmp.ne.s32.totalorder %s67, %s68
      %p82 = scmp.eq.s32.totalorder %s34, 1
      %p83 = por %p81, %p82
      %p85 = scmp.ne.s32.totalorder %s68, %s84
      %p86 = scmp.eq.s32.totalorder %s34, 0
      %p87 = por %p85, %p86
      %s88 = ssub.s32 %s28, %s35
      %p89 = scmp.eq.s32.totalorder %s88, 0
      %s91 = sadd.s32 %s90, 1
      %s92 = scalar_select %p89, %s90, %s91
      %p95 = pneg %p89
      %p96 = scmp.eq.s32.totalorder %s28, 1
      %p97 = por %p95, %p96
      %p98 = scmp.ne.s32.totalorder %s90, %s93
      %p99 = scmp.eq.s32.totalorder %s28, 0
      %p100 = por %p98, %p99
      %p101 = scmp.ne.s32.totalorder %s90, %s93
      %p102 = scmp.eq.s32.totalorder %s33, 1
      %p103 = por %p101, %p102
      %p104 = scmp.ne.s32.totalorder %s93, %s94
      %p105 = scmp.eq.s32.totalorder %s33, 0
      %p106 = por %p104, %p105
      %p107 = scmp.ne.s32.totalorder %s93, %s94
      %p108 = scmp.eq.s32.totalorder %s34, 1
      %p109 = por %p107, %p108
      %p111 = scmp.ne.s32.totalorder %s94, %s110
      %p112 = scmp.eq.s32.totalorder %s34, 0
      %p113 = por %p111, %p112
      %s115 = sadd.s32 %s114, 1
      %p118 = scmp.eq.s32.totalorder %s28, 1
      %p119 = scmp.ne.s32.totalorder %s114, %s116
      %p120 = scmp.eq.s32.totalorder %s28, 0
      %p121 = por %p119, %p120
      %p122 = scmp.ne.s32.totalorder %s114, %s116
      %p123 = scmp.eq.s32.totalorder %s33, 1
      %p124 = por %p122, %p123
      %p125 = scmp.ne.s32.totalorder %s116, %s117
      %p126 = scmp.eq.s32.totalorder %s33, 0
      %p127 = por %p125, %p126
      %p128 = scmp.ne.s32.totalorder %s116, %s117
      %p129 = scmp.eq.s32.totalorder %s34, 1
      %p130 = por %p128, %p129
      %p132 = scmp.ne.s32.totalorder %s117, %s131
      %p133 = scmp.eq.s32.totalorder %s34, 0
      %p134 = por %p132, %p133
      %s136 = sadd.s32 %s135, 1
      %p139 = scmp.eq.s32.totalorder %s28, 1
      %p140 = scmp.ne.s32.totalorder %s135, %s137
      %p141 = scmp.eq.s32.totalorder %s28, 0
      %p142 = por %p140, %p141
      %p143 = scmp.ne.s32.totalorder %s135, %s137
      %p144 = scmp.eq.s32.totalorder %s33, 1
      %p145 = por %p143, %p144
      %p146 = scmp.ne.s32.totalorder %s137, %s138
      %p147 = scmp.eq.s32.totalorder %s33, 0
      %p148 = por %p146, %p147
      %p149 = scmp.ne.s32.totalorder %s137, %s138
      %p150 = scmp.eq.s32.totalorder %s34, 1
      %p151 = por %p149, %p150
      %p153 = scmp.ne.s32.totalorder %s138, %s152
      %p154 = scmp.eq.s32.totalorder %s34, 0
      %p155 = por %p153, %p154
      %s157 = sadd.s32 %s156, 1
      %p160 = scmp.eq.s32.totalorder %s28, 1
      %p161 = scmp.ne.s32.totalorder %s156, %s158
      %p162 = scmp.eq.s32.totalorder %s28, 0
      %p163 = por %p161, %p162
      %p164 = scmp.ne.s32.totalorder %s156, %s158
      %p165 = scmp.eq.s32.totalorder %s33, 1
      %p166 = por %p164, %p165
      %p167 = scmp.ne.s32.totalorder %s158, %s159
      %p168 = scmp.eq.s32.totalorder %s33, 0
      %p169 = por %p167, %p168
      %p170 = scmp.ne.s32.totalorder %s158, %s159
      %p171 = scmp.eq.s32.totalorder %s34, 1
      %p172 = por %p170, %p171
      %p174 = scmp.ne.s32.totalorder %s159, %s173
      %p175 = scmp.eq.s32.totalorder %s34, 0
      %p176 = por %p174, %p175
      %s178 = sadd.s32 %s177, 1
      %p181 = scmp.eq.s32.totalorder %s28, 1
      %p182 = scmp.ne.s32.totalorder %s177, %s179
      %p183 = scmp.eq.s32.totalorder %s28, 0
      %p184 = por %p182, %p183
      %p185 = scmp.ne.s32.totalorder %s177, %s179
      %p186 = scmp.eq.s32.totalorder %s33, 1
      %p187 = por %p185, %p186
      %p188 = scmp.ne.s32.totalorder %s179, %s180
      %p189 = scmp.eq.s32.totalorder %s33, 0
      %p190 = por %p188, %p189
      %p191 = scmp.ne.s32.totalorder %s179, %s180
      %p192 = scmp.eq.s32.totalorder %s34, 1
      %p193 = por %p191, %p192
      %p195 = scmp.ne.s32.totalorder %s180, %s194
      %p196 = scmp.eq.s32.totalorder %s34, 0
      %p197 = por %p195, %p196
      %s199 = sadd.s32 %s198, 1
      %p202 = scmp.eq.s32.totalorder %s28, 1
      %p203 = scmp.ne.s32.totalorder %s198, %s200
      %p204 = scmp.eq.s32.totalorder %s28, 0
      %p205 = por %p203, %p204
      %p206 = scmp.ne.s32.totalorder %s198, %s200
      %p207 = scmp.eq.s32.totalorder %s33, 1
      %p208 = por %p206, %p207
      %p209 = scmp.ne.s32.totalorder %s200, %s201
      %p210 = scmp.eq.s32.totalorder %s33, 0
      %p211 = por %p209, %p210
      %p212 = scmp.ne.s32.totalorder %s200, %s201
      %p213 = scmp.eq.s32.totalorder %s34, 1
      %p214 = por %p212, %p213
      %p216 = scmp.ne.s32.totalorder %s201, %s215
      %p217 = scmp.eq.s32.totalorder %s34, 0
      %p218 = por %p216, %p217
      %s220 = sadd.s32 %s219, 1
      %p223 = scmp.eq.s32.totalorder %s28, 1
      %p224 = scmp.ne.s32.totalorder %s219, %s221
      %p225 = scmp.eq.s32.totalorder %s28, 0
      %p226 = por %p224, %p225
      %p227 = scmp.ne.s32.totalorder %s219, %s221
      %p228 = scmp.eq.s32.totalorder %s33, 1
      %p229 = por %p227, %p228
      %p230 = scmp.ne.s32.totalorder %s221, %s222
      %p231 = scmp.eq.s32.totalorder %s33, 0
      %p232 = por %p230, %p231
      %p233 = scmp.ne.s32.totalorder %s221, %s222
      %p234 = scmp.eq.s32.totalorder %s34, 1
      %p235 = por %p233, %p234
      %p237 = scmp.ne.s32.totalorder %s222, %s236
      %p238 = scmp.eq.s32.totalorder %s34, 0
      %p239 = por %p237, %p238
      %s241 = sadd.s32 %s240, 1
      %p244 = scmp.eq.s32.totalorder %s28, 1
      %p245 = scmp.ne.s32.totalorder %s240, %s242
      %p246 = scmp.eq.s32.totalorder %s28, 0
      %p247 = por %p245, %p246
      %p248 = scmp.ne.s32.totalorder %s240, %s242
      %p249 = scmp.eq.s32.totalorder %s33, 1
      %p250 = por %p248, %p249
      %p251 = scmp.ne.s32.totalorder %s242, %s243
      %p252 = scmp.eq.s32.totalorder %s33, 0
      %p253 = por %p251, %p252
      %p254 = scmp.ne.s32.totalorder %s242, %s243
      %p255 = scmp.eq.s32.totalorder %s34, 1
      %p256 = por %p254, %p255
      %p258 = scmp.ne.s32.totalorder %s243, %s257
      %p259 = scmp.eq.s32.totalorder %s34, 0
      %p260 = por %p258, %p259
      %s262 = sadd.s32 %s261, 1
      %p265 = scmp.eq.s32.totalorder %s28, 1
      %p266 = scmp.ne.s32.totalorder %s261, %s263
      %p267 = scmp.eq.s32.totalorder %s28, 0
      %p268 = por %p266, %p267
      %p269 = scmp.ne.s32.totalorder %s261, %s263
      %p270 = scmp.eq.s32.totalorder %s33, 1
      %p271 = por %p269, %p270
      %p272 = scmp.ne.s32.totalorder %s263, %s264
      %p273 = scmp.eq.s32.totalorder %s33, 0
      %p274 = por %p272, %p273
      %p275 = scmp.ne.s32.totalorder %s263, %s264
      %p276 = scmp.eq.s32.totalorder %s34, 1
      %p277 = por %p275, %p276
      %p279 = scmp.ne.s32.totalorder %s264, %s278
      %p280 = scmp.eq.s32.totalorder %s34, 0
      %p281 = por %p279, %p280
      %s282 = ssub.s32 %s28, %s35
      %p283 = scmp.eq.s32.totalorder %s282, 0
      %s285 = sadd.s32 %s284, 1
      %s286 = scalar_select %p283, %s284, %s285
      %p289 = pneg %p283
      %p290 = scmp.eq.s32.totalorder %s28, 1
      %p291 = por %p289, %p290
      %p292 = scmp.ne.s32.totalorder %s284, %s287
      %p293 = scmp.eq.s32.totalorder %s28, 0
      %p294 = por %p292, %p293
      %p295 = scmp.ne.s32.totalorder %s284, %s287
      %p296 = scmp.eq.s32.totalorder %s33, 1
      %p297 = por %p295, %p296
      %p298 = scmp.ne.s32.totalorder %s287, %s288
      %p299 = scmp.eq.s32.totalorder %s33, 0
      %p300 = por %p298, %p299
      %p301 = scmp.ne.s32.totalorder %s287, %s288
      %p302 = scmp.eq.s32.totalorder %s34, 1
      %p303 = por %p301, %p302
      %p305 = scmp.ne.s32.totalorder %s288, %s304
      %p306 = scmp.eq.s32.totalorder %s34, 0
      %p307 = por %p305, %p306
      %p308 = scmp.le.s32.totalorder 1, %s28
      %p309 = scmp.lt.s32.totalorder %s28, 3
      %p310 = pnand %p308, %p309
      %p311 = pneg %p310
      // Predicated region
      $region9: #{tpu_custom_call.1} parent=5 // pred_check
        _
      $region10: #{tpu_custom_call.1} parent=5 // pred_check_branch
        %313 = sbr.rel (%p310) target = $region12
      $region11: #{tpu_custom_call.1} parent=5 // pred_region
        %s314 = ssub.s32 %s28, 1
        // Predicated region
        $region13: #{tpu_custom_call.1} parent=11 // pred_check
          %p315 = pneg %p127
        $region14: #{tpu_custom_call.1} parent=11 // pred_check_branch
          %317 = sbr.rel (%p315) target = $region16
        $region15: #{tpu_custom_call.1} parent=11 // pred_region
          %319 = vsyncadd [#allocation9], 0
          %s320 = sshll.u32 %s3, 4
          %s321 = int_to_ptr.hbm [resolvable:$true] %s320
          %s322 = sshll.u32 [#allocation8], 4
          %s323 = int_to_ptr.vmem [resolvable:$true] %s322
          %328 = dma.hbm_to_vmem [thread:$0]  %s321, 512, %s323, [#allocation9], 128, 128, 8
        $region16: #{tpu_custom_call.1} parent=11 // pred_fallthru
          _
        // Predicated region
        $region17: #{tpu_custom_call.1} parent=11 // pred_check
          %p329 = pneg %p148
        $region18: #{tpu_custom_call.1} parent=11 // pred_check_branch
          %331 = sbr.rel (%p329) target = $region20
        $region19: #{tpu_custom_call.1} parent=11 // pred_region
          _
        $region20: #{tpu_custom_call.1} parent=11 // pred_fallthru
          _
        // Predicated region
        $region21: #{tpu_custom_call.1} parent=11 // pred_check
          %p332 = pneg %p169
        $region22: #{tpu_custom_call.1} parent=11 // pred_check_branch
          %334 = sbr.rel (%p332) target = $region24
        $region23: #{tpu_custom_call.1} parent=11 // pred_region
          %336 = vsyncadd [#allocation9], 0
          %s337 = sshll.u32 %s5, 4
          %s338 = int_to_ptr.hbm [resolvable:$true] %s337
          %s339 = sshll.u32 [#allocation10], 4
          %s340 = int_to_ptr.vmem [resolvable:$true] %s339
          %345 = dma.hbm_to_vmem [thread:$0]  %s338, 512, %s340, [#allocation9], 128, 128, 8
        $region24: #{tpu_custom_call.1} parent=11 // pred_fallthru
          _
        // Predicated region
        $region25: #{tpu_custom_call.1} parent=11 // pred_check
          %p346 = pneg %p190
        $region26: #{tpu_custom_call.1} parent=11 // pred_check_branch
          %348 = sbr.rel (%p346) target = $region28
        $region27: #{tpu_custom_call.1} parent=11 // pred_region
          _
        $region28: #{tpu_custom_call.1} parent=11 // pred_fallthru
          _
        // Predicated region
        $region29: #{tpu_custom_call.1} parent=11 // pred_check
          %p349 = pneg %p211
        $region30: #{tpu_custom_call.1} parent=11 // pred_check_branch
          %351 = sbr.rel (%p349) target = $region32
        $region31: #{tpu_custom_call.1} parent=11 // pred_region
          %353 = vsyncadd [#allocation12], 0
          %s354 = sshll.u32 %s7, 4
          %s355 = int_to_ptr.hbm [resolvable:$true] %s354
          %s356 = sshll.u32 [#allocation11], 4
          %s357 = int_to_ptr.vmem [resolvable:$true] %s356
          %362 = dma.hbm_to_vmem [thread:$0]  %s355, 512, %s357, [#allocation12], 128, 128, 8
        $region32: #{tpu_custom_call.1} parent=11 // pred_fallthru
          _
        // Predicated region
        $region33: #{tpu_custom_call.1} parent=11 // pred_check
          %p363 = pneg %p232
        $region34: #{tpu_custom_call.1} parent=11 // pred_check_branch
          %365 = sbr.rel (%p363) target = $region36
        $region35: #{tpu_custom_call.1} parent=11 // pred_region
          _
        $region36: #{tpu_custom_call.1} parent=11 // pred_fallthru
          _
        // Predicated region
        $region37: #{tpu_custom_call.1} parent=11 // pred_check
          %p366 = pneg %p253
        $region38: #{tpu_custom_call.1} parent=11 // pred_check_branch
          %368 = sbr.rel (%p366) target = $region40
        $region39: #{tpu_custom_call.1} parent=11 // pred_region
          %370 = vsyncadd [#allocation12], 0
          %s371 = sshll.u32 %s9, 4
          %s372 = int_to_ptr.hbm [resolvable:$true] %s371
          %s373 = sshll.u32 [#allocation13], 4
          %s374 = int_to_ptr.vmem [resolvable:$true] %s373
          %379 = dma.hbm_to_vmem [thread:$0]  %s372, 512, %s374, [#allocation12], 128, 128, 8
        $region40: #{tpu_custom_call.1} parent=11 // pred_fallthru
          _
        // Predicated region
        $region41: #{tpu_custom_call.1} parent=11 // pred_check
          %p380 = pneg %p274
        $region42: #{tpu_custom_call.1} parent=11 // pred_check_branch
          %382 = sbr.rel (%p380) target = $region44
        $region43: #{tpu_custom_call.1} parent=11 // pred_region
          _
        $region44: #{tpu_custom_call.1} parent=11 // pred_fallthru
          _
      $region12: #{tpu_custom_call.1} parent=5 // pred_fallthru
        _
      %p383 = scmp.lt.s32.totalorder %s28, 2
      // Predicated region
      $region45: #{tpu_custom_call.1} parent=5 // pred_check
        %p384 = pneg %p383
      $region46: #{tpu_custom_call.1} parent=5 // pred_check_branch
        %386 = sbr.rel (%p384) target = $region48
      $region47: #{tpu_custom_call.1} parent=5 // pred_region
        // Predicated region
        $region49: #{tpu_custom_call.1} parent=47 // pred_check
          %p387 = pneg %p48
        $region50: #{tpu_custom_call.1} parent=47 // pred_check_branch
          %389 = sbr.rel (%p387) target = $region52
        $region51: #{tpu_custom_call.1} parent=47 // pred_region
          %s390 = sand.u32 %s38, 1
          %s391 = scalar_lea.sflag [#allocation3], %s390
          %s392 = sand.u32 %s38, 1
          %s393 = smul.addr %s392, 16
          %s394 = scalar_lea.vmem [#allocation2], %s393
          %s395 = smul.u32 2, %s28
          %397 = vsyncadd %s391, 0
          %s398 = smul.addr %s395, 8
          %s399 = scalar_lea.hbm %s0, %s398
          %s400 = sshll.u32 %s399, 4
          %s401 = int_to_ptr.hbm [resolvable:$true] %s400
          %s402 = sshll.u32 %s394, 4
          %s403 = int_to_ptr.vmem [resolvable:$true] %s402
          %408 = dma.hbm_to_vmem [thread:$0]  %s401, 256, %s403, %s391, 128, 128, 8
        $region52: #{tpu_custom_call.1} parent=47 // pred_fallthru
          _
        // Predicated region
        $region53: #{tpu_custom_call.1} parent=47 // pred_check
          %p409 = pneg %p74
        $region54: #{tpu_custom_call.1} parent=47 // pred_check_branch
          %411 = sbr.rel (%p409) target = $region56
        $region55: #{tpu_custom_call.1} parent=47 // pred_region
          %s412 = sand.u32 %s28, 1
          %s413 = scalar_lea.sflag [#allocation6], %s412
          %s414 = sand.u32 %s64, 1
          %s415 = smul.addr %s414, 16
          %s416 = scalar_lea.vmem [#allocation5], %s415
          %s417 = smul.u32 2, %s28
          %419 = vsyncadd %s413, 0
          %s420 = smul.addr %s417, 8
          %s421 = scalar_lea.hbm %s1, %s420
          %s422 = sshll.u32 %s421, 4
          %s423 = int_to_ptr.hbm [resolvable:$true] %s422
          %s424 = sshll.u32 %s416, 4
          %s425 = int_to_ptr.vmem [resolvable:$true] %s424
          %430 = dma.hbm_to_vmem [thread:$0]  %s423, 256, %s425, %s413, 128, 128, 8
        $region56: #{tpu_custom_call.1} parent=47 // pred_fallthru
          _
        // Predicated region
        $region57: #{tpu_custom_call.1} parent=47 // pred_check
          %p431 = pneg %p100
        $region58: #{tpu_custom_call.1} parent=47 // pred_check_branch
          %433 = sbr.rel (%p431) target = $region60
        $region59: #{tpu_custom_call.1} parent=47 // pred_region
          %s434 = sand.u32 %s28, 1
          %s435 = scalar_lea.sflag [#allocation6], %s434
          %s436 = sand.u32 %s90, 1
          %s437 = smul.addr %s436, 16
          %s438 = scalar_lea.vmem [#allocation7], %s437
          %s439 = smul.u32 2, %s28
          %441 = vsyncadd %s435, 0
          %s442 = smul.addr %s439, 8
          %s443 = scalar_lea.hbm %s2, %s442
          %s444 = sshll.u32 %s443, 4
          %s445 = int_to_ptr.hbm [resolvable:$true] %s444
          %s446 = sshll.u32 %s438, 4
          %s447 = int_to_ptr.vmem [resolvable:$true] %s446
          %452 = dma.hbm_to_vmem [thread:$0]  %s445, 256, %s447, %s435, 128, 128, 8
        $region60: #{tpu_custom_call.1} parent=47 // pred_fallthru
          _
      $region48: #{tpu_custom_call.1} parent=5 // pred_fallthru
        _
      %p453 = scmp.le.s32.totalorder 1, %s28
      %p454 = scmp.lt.s32.totalorder %s28, 3
      %p455 = pnand %p453, %p454
      %p456 = pneg %p455
      // Predicated region
      $region61: #{tpu_custom_call.1} parent=5 // pred_check
        _
      $region62: #{tpu_custom_call.1} parent=5 // pred_check_branch
        %458 = sbr.rel (%p455) target = $region64
      $region63: #{tpu_custom_call.1} parent=5 // pred_region
        %s459 = ssub.s32 %s28, 1
        %s460 = sand.u32 %s41, 1
        %s461 = scalar_lea.sflag [#allocation3], %s460
        %s462 = sand.u32 %s41, 1
        %s463 = smul.addr %s462, 16
        %s464 = scalar_lea.vmem [#allocation2], %s463
        // Predicated region
        $region65: #{tpu_custom_call.1} parent=63 // pred_check
          %p465 = pneg %p54
        $region66: #{tpu_custom_call.1} parent=63 // pred_check_branch
          %467 = sbr.rel (%p465) target = $region68
        $region67: #{tpu_custom_call.1} parent=63 // pred_region
          %469 = dma.done %s461, 256
        $region68: #{tpu_custom_call.1} parent=63 // pred_fallthru
          _
        %s470 = sand.u32 %s33, 1
        %s471 = scalar_lea.sflag [#allocation6], %s470
        %s472 = sand.u32 %s67, 1
        %s473 = smul.addr %s472, 16
        %s474 = scalar_lea.vmem [#allocation5], %s473
        // Predicated region
        $region69: #{tpu_custom_call.1} parent=63 // pred_check
          %p475 = pneg %p80
        $region70: #{tpu_custom_call.1} parent=63 // pred_check_branch
          %477 = sbr.rel (%p475) target = $region72
        $region71: #{tpu_custom_call.1} parent=63 // pred_region
          %479 = dma.done %s471, 256
        $region72: #{tpu_custom_call.1} parent=63 // pred_fallthru
          _
        %s480 = sand.u32 %s33, 1
        %s481 = scalar_lea.sflag [#allocation6], %s480
        %s482 = sand.u32 %s93, 1
        %s483 = smul.addr %s482, 16
        %s484 = scalar_lea.vmem [#allocation7], %s483
        // Predicated region
        $region73: #{tpu_custom_call.1} parent=63 // pred_check
          %p485 = pneg %p106
        $region74: #{tpu_custom_call.1} parent=63 // pred_check_branch
          %487 = sbr.rel (%p485) target = $region76
        $region75: #{tpu_custom_call.1} parent=63 // pred_region
          %489 = dma.done %s481, 256
        $region76: #{tpu_custom_call.1} parent=63 // pred_fallthru
          _
        // Predicated region
        $region77: #{tpu_custom_call.1} parent=63 // pred_check
          %p490 = pneg %p127
        $region78: #{tpu_custom_call.1} parent=63 // pred_check_branch
          %492 = sbr.rel (%p490) target = $region80
        $region79: #{tpu_custom_call.1} parent=63 // pred_region
          %494 = dma.done [#allocation9], 512
        $region80: #{tpu_custom_call.1} parent=63 // pred_fallthru
          _
        // Predicated region
        $region81: #{tpu_custom_call.1} parent=63 // pred_check
          %p495 = pneg %p169
        $region82: #{tpu_custom_call.1} parent=63 // pred_check_branch
          %497 = sbr.rel (%p495) target = $region84
        $region83: #{tpu_custom_call.1} parent=63 // pred_region
          %499 = dma.done [#allocation9], 512
        $region84: #{tpu_custom_call.1} parent=63 // pred_fallthru
          _
        // Predicated region
        $region85: #{tpu_custom_call.1} parent=63 // pred_check
          %p500 = pneg %p211
        $region86: #{tpu_custom_call.1} parent=63 // pred_check_branch
          %502 = sbr.rel (%p500) target = $region88
        $region87: #{tpu_custom_call.1} parent=63 // pred_region
          %504 = dma.done [#allocation12], 512
        $region88: #{tpu_custom_call.1} parent=63 // pred_fallthru
          _
        // Predicated region
        $region89: #{tpu_custom_call.1} parent=63 // pred_check
          %p505 = pneg %p253
        $region90: #{tpu_custom_call.1} parent=63 // pred_check_branch
          %507 = sbr.rel (%p505) target = $region92
        $region91: #{tpu_custom_call.1} parent=63 // pred_region
          %509 = dma.done [#allocation12], 512
        $region92: #{tpu_custom_call.1} parent=63 // pred_fallthru
          _
        %s510 = sand.u32 %s41, 1
        %s511 = scalar_lea.sflag [#allocation3], %s510
        %s512 = sand.u32 %s41, 1
        %s513 = smul.addr %s512, 16
        %s514 = scalar_lea.vmem [#allocation2], %s513
        %p515 = pneg %p54
        %p516 = pneg %p51
        %s517 = sand.u32 %s33, 1
        %s518 = scalar_lea.sflag [#allocation6], %s517
        %s519 = sand.u32 %s67, 1
        %s520 = smul.addr %s519, 16
        %s521 = scalar_lea.vmem [#allocation5], %s520
        %p522 = pneg %p80
        %p523 = pneg %p77
        %s524 = sand.u32 %s33, 1
        %s525 = scalar_lea.sflag [#allocation6], %s524
        %s526 = sand.u32 %s93, 1
        %s527 = smul.addr %s526, 16
        %s528 = scalar_lea.vmem [#allocation7], %s527
        %p529 = pneg %p106
        %p530 = pneg %p103
        %p531 = pneg %p127
        %p532 = pneg %p124
        %p533 = pneg %p148
        %p534 = pneg %p145
        %p535 = pneg %p169
        %p536 = pneg %p166
        %p537 = pneg %p190
        %p538 = pneg %p187
        %p539 = pneg %p211
        %p540 = pneg %p208
        %p541 = pneg %p232
        %p542 = pneg %p229
        %p543 = pneg %p253
        %p544 = pneg %p250
        %p545 = pneg %p274
        %p546 = pneg %p271
        %p547 = pneg %p300
        %p548 = pneg %p297
        %s549 = sand.u32 %s287, 1
        %s550 = scalar_lea.sflag [#allocation4], %s549
        %s551 = sand.u32 %s287, 1
        %s552 = smul.addr %s551, 16
        %s553 = scalar_lea.vmem [#allocation14], %s552
        %s554 = smul.u32 2, %s33
        %s555 = smul.u32 2, %s33
        %s556 = smul.u32 2, %s33
        %s557 = smul.u32 2, %s33
        %v558 = vld [vmem:[%s464] sm:$0xff]
        %v559 = vld [vmem:[%s464 + $0x8] sm:$0xff]
        %v560 = vld [vmem:[%s474] sm:$0xff]
        %v561 = vld [vmem:[%s474 + $0x8] sm:$0xff]
        %v562 = vld [vmem:[%s484] sm:$0xff]
        %v563 = vld [vmem:[%s484 + $0x8] sm:$0xff]
        %v564 = vld [vmem:[#allocation8] sm:$0xff]
        %v565 = vld [vmem:[#allocation8 + $0x8] sm:$0xff]
        %v566 = vld [vmem:[#allocation8 + $0x10] sm:$0xff]
        %v567 = vld [vmem:[#allocation8 + $0x18] sm:$0xff]
        %v568 = vld [vmem:[%s4] sm:$0x1]
        %v570 = vperm.slane %v568, 0
        %vm572 = vcmask 261120
        %v574 = vsel %vm572, %v558, 0
        %v577 = vsel %vm572, %v559, 0
        %579 = vmatpush.msra.mxu0 0.0
        %580 = vmatpush.msra.mxu0 0.0
        %581 = vmatpush.msra.mxu0 0.0
        %582 = vmatpush.msra.mxu0 0.0
        %583 = vmatpush.msra.mxu0 0.0
        %584 = vmatpush.msra.mxu0 0.0
        %585 = vmatpush.msra.mxu0 0.0
        %586 = vmatpush.msra.mxu0 0.0
        %587 = vmatpush.msra.mxu0 0.0
        %588 = vmatpush.msra.mxu0 0.0
        %589 = vmatpush.msra.mxu0 0.0
        %590 = vmatpush.msra.mxu0 0.0
        %591 = vmatpush.msra.mxu0 %v567
        %592 = vmatpush.msra.mxu0 %v566
        %593 = vmatpush.msra.mxu0 %v565
        %594 = vmatpush.msra.mxu0 %v564
        %595 = vmatmul.f32.gmra.mxu0 %v574
        %v596 = vpop.f32.mrf.mxu0
        %v597 = vadd.f32 %v570, %v596
        %598 = vmatmul.f32.gmra.mxu0 %v577
        %v599 = vpop.f32.mrf.mxu0
        %v600 = vadd.f32 %v570, %v599
        %601 = vdwg.mxu0
        %v602 = vld [vmem:[#allocation10] sm:$0xff]
        %v603 = vld [vmem:[#allocation10 + $0x8] sm:$0xff]
        %v604 = vld [vmem:[#allocation10 + $0x10] sm:$0xff]
        %v605 = vld [vmem:[#allocation10 + $0x18] sm:$0xff]
        %v606 = vld [vmem:[%s6] sm:$0x1]
        %v608 = vperm.slane %v606, 0
        %v611 = vsel %vm572, %v560, 0
        %v614 = vsel %vm572, %v561, 0
        %616 = vmatpush.msra.mxu0 0.0
        %617 = vmatpush.msra.mxu0 0.0
        %618 = vmatpush.msra.mxu0 0.0
        %619 = vmatpush.msra.mxu0 0.0
        %620 = vmatpush.msra.mxu0 0.0
        %621 = vmatpush.msra.mxu0 0.0
        %622 = vmatpush.msra.mxu0 0.0
        %623 = vmatpush.msra.mxu0 0.0
        %624 = vmatpush.msra.mxu0 0.0
        %625 = vmatpush.msra.mxu0 0.0
        %626 = vmatpush.msra.mxu0 0.0
        %627 = vmatpush.msra.mxu0 0.0
        %628 = vmatpush.msra.mxu0 %v605
        %629 = vmatpush.msra.mxu0 %v604
        %630 = vmatpush.msra.mxu0 %v603
        %631 = vmatpush.msra.mxu0 %v602
        %632 = vmatmul.f32.gmra.mxu0 %v611
        %v633 = vpop.f32.mrf.mxu0
        %v634 = vadd.f32 %v608, %v633
        %635 = vmatmul.f32.gmra.mxu0 %v614
        %v636 = vpop.f32.mrf.mxu0
        %v637 = vadd.f32 %v608, %v636
        %638 = vdwg.mxu0
        %v639 = vld [vmem:[#allocation11] sm:$0xff]
        %v640 = vld [vmem:[#allocation11 + $0x8] sm:$0xff]
        %v641 = vld [vmem:[#allocation11 + $0x10] sm:$0xff]
        %v642 = vld [vmem:[#allocation11 + $0x18] sm:$0xff]
        %v643 = vld [vmem:[%s8] sm:$0x1]
        %v645 = vperm.slane %v643, 0
        %v648 = vsel %vm572, %v562, 0
        %v651 = vsel %vm572, %v563, 0
        %653 = vmatpush.msra.mxu0 0.0
        %654 = vmatpush.msra.mxu0 0.0
        %655 = vmatpush.msra.mxu0 0.0
        %656 = vmatpush.msra.mxu0 0.0
        %657 = vmatpush.msra.mxu0 0.0
        %658 = vmatpush.msra.mxu0 0.0
        %659 = vmatpush.msra.mxu0 0.0
        %660 = vmatpush.msra.mxu0 0.0
        %661 = vmatpush.msra.mxu0 0.0
        %662 = vmatpush.msra.mxu0 0.0
        %663 = vmatpush.msra.mxu0 0.0
        %664 = vmatpush.msra.mxu0 0.0
        %665 = vmatpush.msra.mxu0 %v642
        %666 = vmatpush.msra.mxu0 %v641
        %667 = vmatpush.msra.mxu0 %v640
        %668 = vmatpush.msra.mxu0 %v639
        %669 = vmatmul.f32.gmra.mxu0 %v648
        %v670 = vpop.f32.mrf.mxu0
        %v671 = vadd.f32 %v645, %v670
        %672 = vmatmul.f32.gmra.mxu0 %v651
        %v673 = vpop.f32.mrf.mxu0
        %v674 = vadd.f32 %v645, %v673
        %675 = vdwg.mxu0
        %v676 = vld [vmem:[#allocation13] sm:$0xff]
        %v677 = vld [vmem:[#allocation13 + $0x8] sm:$0xff]
        %v678 = vld [vmem:[#allocation13 + $0x10] sm:$0xff]
        %v679 = vld [vmem:[#allocation13 + $0x18] sm:$0xff]
        %v680 = vld [vmem:[%s10] sm:$0x1]
        %v682 = vperm.slane %v680, 0
        %v684 = vadd.f32 %v682, 0.0
        %vm685 = vcmask 64512
        %v687 = vsel %vm685, %v597, 0
        %v690 = vsel %vm685, %v634, 0
        %692 = vmatpush.xpose.msra.mxu0 0.0
        %693 = vmatpush.xpose.msra.mxu0 0.0
        %694 = vmatpush.xpose.msra.mxu0 0.0
        %695 = vmatpush.xpose.msra.mxu0 0.0
        %696 = vmatpush.xpose.msra.mxu0 0.0
        %697 = vmatpush.xpose.msra.mxu0 0.0
        %698 = vmatpush.xpose.msra.mxu0 0.0
        %699 = vmatpush.xpose.msra.mxu0 0.0
        %700 = vmatpush.xpose.msra.mxu0 0.0
        %701 = vmatpush.xpose.msra.mxu0 0.0
        %702 = vmatpush.xpose.msra.mxu0 0.0
        %703 = vmatpush.xpose.msra.mxu0 0.0
        %704 = vmatpush.xpose.msra.mxu0 0.0
        %705 = vmatpush.xpose.msra.mxu0 0.0
        %706 = vmatpush.xpose.msra.mxu0 0.0
        %707 = vmatpush.xpose.msra.mxu0 %v690
        %708 = vmatmul.f32.gmra.mxu0 %v687
        %v709 = vpop.f32.mrf.mxu0
        %v710 = vadd.f32 0.0, %v709
        %711 = vdwg.mxu0
        %v713 = vsel %vm685, %v600, 0
        %v716 = vsel %vm685, %v637, 0
        %718 = vmatpush.xpose.msra.mxu0 0.0
        %719 = vmatpush.xpose.msra.mxu0 0.0
        %720 = vmatpush.xpose.msra.mxu0 0.0
        %721 = vmatpush.xpose.msra.mxu0 0.0
        %722 = vmatpush.xpose.msra.mxu0 0.0
        %723 = vmatpush.xpose.msra.mxu0 0.0
        %724 = vmatpush.xpose.msra.mxu0 0.0
        %725 = vmatpush.xpose.msra.mxu0 0.0
        %726 = vmatpush.xpose.msra.mxu0 0.0
        %727 = vmatpush.xpose.msra.mxu0 0.0
        %728 = vmatpush.xpose.msra.mxu0 0.0
        %729 = vmatpush.xpose.msra.mxu0 0.0
        %730 = vmatpush.xpose.msra.mxu0 0.0
        %731 = vmatpush.xpose.msra.mxu0 0.0
        %732 = vmatpush.xpose.msra.mxu0 0.0
        %733 = vmatpush.xpose.msra.mxu0 %v716
        %734 = vmatmul.f32.gmra.mxu0 %v713
        %v735 = vpop.f32.mrf.mxu0
        %v736 = vadd.f32 0.0, %v735
        %737 = vdwg.mxu0
        %v738 = vmul.f32 %v710, 2.828427
        %v739 = vmul.f32 %v736, 2.828427
        %v740 = vsel %vm685, %v738, -inf
        %741 = vmax.xlane.f32.xlu0 %v740
        %v742 = vpop.xlane.xlu0 %741
        %v743 = vsel %vm685, %v739, -inf
        %744 = vmax.xlane.f32.xlu0 %v743
        %v745 = vpop.xlane.xlu0 %744
        %v746 = vsub.f32 %v738, %v742
        %v747 = vsub.f32 %v739, %v745
        %v748 = vmul.f32 %v746, 1.442695
        %v749 = vpow.pop %v748
        %v750 = vmul.f32 %v747, 1.442695
        %v751 = vpow.pop %v750
        %v752 = vsel %vm685, %v749, 0.0
        %753 = vadd.xlane.f32.xlu0 %v752
        %v754 = vpop.xlane.xlu0 %753
        %v755 = vsel %vm685, %v751, 0.0
        %756 = vadd.xlane.f32.xlu0 %v755
        %v757 = vpop.xlane.xlu0 %756
        %v758 = vrcp.pop %v754
        %v759 = vmul.f32 %v754, %v758
        %v760 = vsub.f32 1.0, %v759
        %v761 = vmul.f32 %v758, %v760
        %v762 = vadd.f32 %v758, %v761
        %vm763 = vweird.f32 %v754
        %vm764 = vweird.f32 %v758
        %vm765 = vmor %vm763, %vm764
        %v766 = vsel %vm765, %v758, %v762
        %v767 = vand.u32 2147483647, %v754
        %vm768 = vcmp.eq.f32.partialorder %v767, 8.507059e+37
        %v769 = vand.u32 %v754, 2147483648
        %v770 = vor.u32 1.1754944e-38, %v769
        %v771 = vsel %vm768, %v770, %v766
        %v772 = vrcp.pop %v757
        %v773 = vmul.f32 %v757, %v772
        %v774 = vsub.f32 1.0, %v773
        %v775 = vmul.f32 %v772, %v774
        %v776 = vadd.f32 %v772, %v775
        %vm777 = vweird.f32 %v757
        %vm778 = vweird.f32 %v772
        %vm779 = vmor %vm777, %vm778
        %v780 = vsel %vm779, %v772, %v776
        %v781 = vand.u32 2147483647, %v757
        %vm782 = vcmp.eq.f32.partialorder %v781, 8.507059e+37
        %v783 = vand.u32 %v757, 2147483648
        %v784 = vor.u32 1.1754944e-38, %v783
        %v785 = vsel %vm782, %v784, %v780
        %v786 = vmul.f32 %v749, %v771
        %v787 = vmul.f32 %v751, %v785
        %v789 = vsel %vm685, %v786, 0
        %791 = vmatpush.msra.mxu0 0.0
        %792 = vmatpush.msra.mxu0 0.0
        %793 = vmatpush.msra.mxu0 0.0
        %794 = vmatpush.msra.mxu0 0.0
        %795 = vmatpush.msra.mxu0 0.0
        %796 = vmatpush.msra.mxu0 0.0
        %797 = vmatpush.msra.mxu0 0.0
        %798 = vmatpush.msra.mxu0 0.0
        %799 = vmatpush.msra.mxu0 0.0
        %800 = vmatpush.msra.mxu0 0.0
        %801 = vmatpush.msra.mxu0 0.0
        %802 = vmatpush.msra.mxu0 0.0
        %803 = vmatpush.msra.mxu0 0.0
        %804 = vmatpush.msra.mxu0 0.0
        %805 = vmatpush.msra.mxu0 0.0
        %806 = vmatpush.msra.mxu0 %v671
        %807 = vmatmul.f32.gmra.mxu0 %v789
        %v808 = vpop.f32.mrf.mxu0
        %v809 = vadd.f32 0.0, %v808
        %810 = vdwg.mxu0
        %v812 = vsel %vm685, %v787, 0
        %814 = vmatpush.msra.mxu0 0.0
        %815 = vmatpush.msra.mxu0 0.0
        %816 = vmatpush.msra.mxu0 0.0
        %817 = vmatpush.msra.mxu0 0.0
        %818 = vmatpush.msra.mxu0 0.0
        %819 = vmatpush.msra.mxu0 0.0
        %820 = vmatpush.msra.mxu0 0.0
        %821 = vmatpush.msra.mxu0 0.0
        %822 = vmatpush.msra.mxu0 0.0
        %823 = vmatpush.msra.mxu0 0.0
        %824 = vmatpush.msra.mxu0 0.0
        %825 = vmatpush.msra.mxu0 0.0
        %826 = vmatpush.msra.mxu0 0.0
        %827 = vmatpush.msra.mxu0 0.0
        %828 = vmatpush.msra.mxu0 0.0
        %829 = vmatpush.msra.mxu0 %v674
        %830 = vmatmul.f32.gmra.mxu0 %v812
        %v831 = vpop.f32.mrf.mxu0
        %v832 = vadd.f32 0.0, %v831
        %833 = vdwg.mxu0
        %v835 = vsel %vm685, %v809, 0
        %v838 = vsel %vm685, %v832, 0
        %840 = vmatpush.msra.mxu0 0.0
        %841 = vmatpush.msra.mxu0 0.0
        %842 = vmatpush.msra.mxu0 0.0
        %843 = vmatpush.msra.mxu0 0.0
        %844 = vmatpush.msra.mxu0 0.0
        %845 = vmatpush.msra.mxu0 0.0
        %846 = vmatpush.msra.mxu0 0.0
        %847 = vmatpush.msra.mxu0 0.0
        %848 = vmatpush.msra.mxu0 0.0
        %849 = vmatpush.msra.mxu0 0.0
        %850 = vmatpush.msra.mxu0 0.0
        %851 = vmatpush.msra.mxu0 0.0
        %852 = vmatpush.msra.mxu0 0.0
        %853 = vmatpush.msra.mxu0 0.0
        %854 = vmatpush.msra.mxu0 0.0
        %855 = vmatpush.msra.mxu0 %v676
        %856 = vmatmul.f32.gmra.mxu0 %v835
        %v857 = vpop.f32.mrf.mxu0
        %v858 = vadd.f32 0.0, %v857
        %859 = vmatmul.f32.gmra.mxu0 %v838
        %v860 = vpop.f32.mrf.mxu0
        %v861 = vadd.f32 0.0, %v860
        %862 = vdwg.mxu0
        %v863 = vadd.f32 %v684, %v858
        %v864 = vadd.f32 %v684, %v861
        %865 = vrot.lane.b32.xlu0 %v597, 120
        %v866 = vpop.permute.xlu0 %865
        %867 = vrot.lane.b32.xlu0 %v634, 120
        %v868 = vpop.permute.xlu0 %867
        %v869 = vsel %vm685, %v866, 0
        %v871 = vsel %vm685, %v868, 0
        %873 = vmatpush.xpose.msra.mxu0 0.0
        %874 = vmatpush.xpose.msra.mxu0 0.0
        %875 = vmatpush.xpose.msra.mxu0 0.0
        %876 = vmatpush.xpose.msra.mxu0 0.0
        %877 = vmatpush.xpose.msra.mxu0 0.0
        %878 = vmatpush.xpose.msra.mxu0 0.0
        %879 = vmatpush.xpose.msra.mxu0 0.0
        %880 = vmatpush.xpose.msra.mxu0 0.0
        %881 = vmatpush.xpose.msra.mxu0 0.0
        %882 = vmatpush.xpose.msra.mxu0 0.0
        %883 = vmatpush.xpose.msra.mxu0 0.0
        %884 = vmatpush.xpose.msra.mxu0 0.0
        %885 = vmatpush.xpose.msra.mxu0 0.0
        %886 = vmatpush.xpose.msra.mxu0 0.0
        %887 = vmatpush.xpose.msra.mxu0 0.0
        %888 = vmatpush.xpose.msra.mxu0 %v871
        %889 = vmatmul.f32.gmra.mxu0 %v869
        %v890 = vpop.f32.mrf.mxu0
        %v891 = vadd.f32 0.0, %v890
        %892 = vdwg.mxu0
        %893 = vrot.lane.b32.xlu0 %v600, 120
        %v894 = vpop.permute.xlu0 %893
        %895 = vrot.lane.b32.xlu0 %v637, 120
        %v896 = vpop.permute.xlu0 %895
        %v897 = vsel %vm685, %v894, 0
        %v899 = vsel %vm685, %v896, 0
        %901 = vmatpush.xpose.msra.mxu0 0.0
        %902 = vmatpush.xpose.msra.mxu0 0.0
        %903 = vmatpush.xpose.msra.mxu0 0.0
        %904 = vmatpush.xpose.msra.mxu0 0.0
        %905 = vmatpush.xpose.msra.mxu0 0.0
        %906 = vmatpush.xpose.msra.mxu0 0.0
        %907 = vmatpush.xpose.msra.mxu0 0.0
        %908 = vmatpush.xpose.msra.mxu0 0.0
        %909 = vmatpush.xpose.msra.mxu0 0.0
        %910 = vmatpush.xpose.msra.mxu0 0.0
        %911 = vmatpush.xpose.msra.mxu0 0.0
        %912 = vmatpush.xpose.msra.mxu0 0.0
        %913 = vmatpush.xpose.msra.mxu0 0.0
        %914 = vmatpush.xpose.msra.mxu0 0.0
        %915 = vmatpush.xpose.msra.mxu0 0.0
        %916 = vmatpush.xpose.msra.mxu0 %v899
        %917 = vmatmul.f32.gmra.mxu0 %v897
        %v918 = vpop.f32.mrf.mxu0
        %v919 = vadd.f32 0.0, %v918
        %920 = vdwg.mxu0
        %v921 = vmul.f32 %v891, 2.828427
        %v922 = vmul.f32 %v919, 2.828427
        %v923 = vsel %vm685, %v921, -inf
        %924 = vmax.xlane.f32.xlu0 %v923
        %v925 = vpop.xlane.xlu0 %924
        %v926 = vsel %vm685, %v922, -inf
        %927 = vmax.xlane.f32.xlu0 %v926
        %v928 = vpop.xlane.xlu0 %927
        %v929 = vsub.f32 %v921, %v925
        %v930 = vsub.f32 %v922, %v928
        %v931 = vmul.f32 %v929, 1.442695
        %v932 = vpow.pop %v931
        %v933 = vmul.f32 %v930, 1.442695
        %v934 = vpow.pop %v933
        %v935 = vsel %vm685, %v932, 0.0
        %936 = vadd.xlane.f32.xlu0 %v935
        %v937 = vpop.xlane.xlu0 %936
        %v938 = vsel %vm685, %v934, 0.0
        %939 = vadd.xlane.f32.xlu0 %v938
        %v940 = vpop.xlane.xlu0 %939
        %v941 = vrcp.pop %v937
        %v942 = vmul.f32 %v937, %v941
        %v943 = vsub.f32 1.0, %v942
        %v944 = vmul.f32 %v941, %v943
        %v945 = vadd.f32 %v941, %v944
        %vm946 = vweird.f32 %v937
        %vm947 = vweird.f32 %v941
        %vm948 = vmor %vm946, %vm947
        %v949 = vsel %vm948, %v941, %v945
        %v950 = vand.u32 2147483647, %v937
        %vm951 = vcmp.eq.f32.partialorder %v950, 8.507059e+37
        %v952 = vand.u32 %v937, 2147483648
        %v953 = vor.u32 1.1754944e-38, %v952
        %v954 = vsel %vm951, %v953, %v949
        %v955 = vrcp.pop %v940
        %v956 = vmul.f32 %v940, %v955
        %v957 = vsub.f32 1.0, %v956
        %v958 = vmul.f32 %v955, %v957
        %v959 = vadd.f32 %v955, %v958
        %vm960 = vweird.f32 %v940
        %vm961 = vweird.f32 %v955
        %vm962 = vmor %vm960, %vm961
        %v963 = vsel %vm962, %v955, %v959
        %v964 = vand.u32 2147483647, %v940
        %vm965 = vcmp.eq.f32.partialorder %v964, 8.507059e+37
        %v966 = vand.u32 %v940, 2147483648
        %v967 = vor.u32 1.1754944e-38, %v966
        %v968 = vsel %vm965, %v967, %v963
        %v969 = vmul.f32 %v932, %v954
        %v970 = vmul.f32 %v934, %v968
        %972 = vrot.lane.b32.xlu0 %v671, 120
        %v973 = vpop.permute.xlu0 %972
        %v976 = vsel %vm685, %v969, 0
        %978 = vmatpush.msra.mxu0 0.0
        %979 = vmatpush.msra.mxu0 0.0
        %980 = vmatpush.msra.mxu0 0.0
        %981 = vmatpush.msra.mxu0 0.0
        %982 = vmatpush.msra.mxu0 0.0
        %983 = vmatpush.msra.mxu0 0.0
        %984 = vmatpush.msra.mxu0 0.0
        %985 = vmatpush.msra.mxu0 0.0
        %986 = vmatpush.msra.mxu0 0.0
        %987 = vmatpush.msra.mxu0 0.0
        %988 = vmatpush.msra.mxu0 0.0
        %989 = vmatpush.msra.mxu0 0.0
        %990 = vmatpush.msra.mxu0 0.0
        %991 = vmatpush.msra.mxu0 0.0
        %992 = vmatpush.msra.mxu0 0.0
        %993 = vmatpush.msra.mxu0 %v973
        %994 = vmatmul.f32.gmra.mxu0 %v976
        %v995 = vpop.f32.mrf.mxu0
        %v996 = vadd.f32 0.0, %v995
        %997 = vdwg.mxu0
        %999 = vrot.lane.b32.xlu0 %v674, 120
        %v1000 = vpop.permute.xlu0 %999
        %v1003 = vsel %vm685, %v970, 0
        %1005 = vmatpush.msra.mxu0 0.0
        %1006 = vmatpush.msra.mxu0 0.0
        %1007 = vmatpush.msra.mxu0 0.0
        %1008 = vmatpush.msra.mxu0 0.0
        %1009 = vmatpush.msra.mxu0 0.0
        %1010 = vmatpush.msra.mxu0 0.0
        %1011 = vmatpush.msra.mxu0 0.0
        %1012 = vmatpush.msra.mxu0 0.0
        %1013 = vmatpush.msra.mxu0 0.0
        %1014 = vmatpush.msra.mxu0 0.0
        %1015 = vmatpush.msra.mxu0 0.0
        %1016 = vmatpush.msra.mxu0 0.0
        %1017 = vmatpush.msra.mxu0 0.0
        %1018 = vmatpush.msra.mxu0 0.0
        %1019 = vmatpush.msra.mxu0 0.0
        %1020 = vmatpush.msra.mxu0 %v1000
        %1021 = vmatmul.f32.gmra.mxu0 %v1003
        %v1022 = vpop.f32.mrf.mxu0
        %v1023 = vadd.f32 0.0, %v1022
        %1024 = vdwg.mxu0
        %v1026 = vsel %vm685, %v996, 0
        %v1029 = vsel %vm685, %v1023, 0
        %1031 = vmatpush.msra.mxu0 0.0
        %1032 = vmatpush.msra.mxu0 0.0
        %1033 = vmatpush.msra.mxu0 0.0
        %1034 = vmatpush.msra.mxu0 0.0
        %1035 = vmatpush.msra.mxu0 0.0
        %1036 = vmatpush.msra.mxu0 0.0
        %1037 = vmatpush.msra.mxu0 0.0
        %1038 = vmatpush.msra.mxu0 0.0
        %1039 = vmatpush.msra.mxu0 0.0
        %1040 = vmatpush.msra.mxu0 0.0
        %1041 = vmatpush.msra.mxu0 0.0
        %1042 = vmatpush.msra.mxu0 0.0
        %1043 = vmatpush.msra.mxu0 0.0
        %1044 = vmatpush.msra.mxu0 0.0
        %1045 = vmatpush.msra.mxu0 0.0
        %1046 = vmatpush.msra.mxu0 %v677
        %1047 = vmatmul.f32.gmra.mxu0 %v1026
        %v1048 = vpop.f32.mrf.mxu0
        %v1049 = vadd.f32 0.0, %v1048
        %1050 = vmatmul.f32.gmra.mxu0 %v1029
        %v1051 = vpop.f32.mrf.mxu0
        %v1052 = vadd.f32 0.0, %v1051
        %1053 = vdwg.mxu0
        %v1054 = vadd.f32 %v863, %v1049
        %v1055 = vadd.f32 %v864, %v1052
        %1056 = vrot.lane.b32.xlu0 %v597, 112
        %v1057 = vpop.permute.xlu0 %1056
        %1058 = vrot.lane.b32.xlu0 %v634, 112
        %v1059 = vpop.permute.xlu0 %1058
        %v1060 = vsel %vm685, %v1057, 0
        %v1062 = vsel %vm685, %v1059, 0
        %1064 = vmatpush.xpose.msra.mxu0 0.0
        %1065 = vmatpush.xpose.msra.mxu0 0.0
        %1066 = vmatpush.xpose.msra.mxu0 0.0
        %1067 = vmatpush.xpose.msra.mxu0 0.0
        %1068 = vmatpush.xpose.msra.mxu0 0.0
        %1069 = vmatpush.xpose.msra.mxu0 0.0
        %1070 = vmatpush.xpose.msra.mxu0 0.0
        %1071 = vmatpush.xpose.msra.mxu0 0.0
        %1072 = vmatpush.xpose.msra.mxu0 0.0
        %1073 = vmatpush.xpose.msra.mxu0 0.0
        %1074 = vmatpush.xpose.msra.mxu0 0.0
        %1075 = vmatpush.xpose.msra.mxu0 0.0
        %1076 = vmatpush.xpose.msra.mxu0 0.0
        %1077 = vmatpush.xpose.msra.mxu0 0.0
        %1078 = vmatpush.xpose.msra.mxu0 0.0
        %1079 = vmatpush.xpose.msra.mxu0 %v1062
        %1080 = vmatmul.f32.gmra.mxu0 %v1060
        %v1081 = vpop.f32.mrf.mxu0
        %v1082 = vadd.f32 0.0, %v1081
        %1083 = vdwg.mxu0
        %1084 = vrot.lane.b32.xlu0 %v600, 112
        %v1085 = vpop.permute.xlu0 %1084
        %1086 = vrot.lane.b32.xlu0 %v637, 112
        %v1087 = vpop.permute.xlu0 %1086
        %v1088 = vsel %vm685, %v1085, 0
        %v1090 = vsel %vm685, %v1087, 0
        %1092 = vmatpush.xpose.msra.mxu0 0.0
        %1093 = vmatpush.xpose.msra.mxu0 0.0
        %1094 = vmatpush.xpose.msra.mxu0 0.0
        %1095 = vmatpush.xpose.msra.mxu0 0.0
        %1096 = vmatpush.xpose.msra.mxu0 0.0
        %1097 = vmatpush.xpose.msra.mxu0 0.0
        %1098 = vmatpush.xpose.msra.mxu0 0.0
        %1099 = vmatpush.xpose.msra.mxu0 0.0
        %1100 = vmatpush.xpose.msra.mxu0 0.0
        %1101 = vmatpush.xpose.msra.mxu0 0.0
        %1102 = vmatpush.xpose.msra.mxu0 0.0
        %1103 = vmatpush.xpose.msra.mxu0 0.0
        %1104 = vmatpush.xpose.msra.mxu0 0.0
        %1105 = vmatpush.xpose.msra.mxu0 0.0
        %1106 = vmatpush.xpose.msra.mxu0 0.0
        %1107 = vmatpush.xpose.msra.mxu0 %v1090
        %1108 = vmatmul.f32.gmra.mxu0 %v1088
        %v1109 = vpop.f32.mrf.mxu0
        %v1110 = vadd.f32 0.0, %v1109
        %1111 = vdwg.mxu0
        %v1112 = vmul.f32 %v1082, 2.828427
        %v1113 = vmul.f32 %v1110, 2.828427
        %v1114 = vsel %vm685, %v1112, -inf
        %1115 = vmax.xlane.f32.xlu0 %v1114
        %v1116 = vpop.xlane.xlu0 %1115
        %v1117 = vsel %vm685, %v1113, -inf
        %1118 = vmax.xlane.f32.xlu0 %v1117
        %v1119 = vpop.xlane.xlu0 %1118
        %v1120 = vsub.f32 %v1112, %v1116
        %v1121 = vsub.f32 %v1113, %v1119
        %v1122 = vmul.f32 %v1120, 1.442695
        %v1123 = vpow.pop %v1122
        %v1124 = vmul.f32 %v1121, 1.442695
        %v1125 = vpow.pop %v1124
        %v1126 = vsel %vm685, %v1123, 0.0
        %1127 = vadd.xlane.f32.xlu0 %v1126
        %v1128 = vpop.xlane.xlu0 %1127
        %v1129 = vsel %vm685, %v1125, 0.0
        %1130 = vadd.xlane.f32.xlu0 %v1129
        %v1131 = vpop.xlane.xlu0 %1130
        %v1132 = vrcp.pop %v1128
        %v1133 = vmul.f32 %v1128, %v1132
        %v1134 = vsub.f32 1.0, %v1133
        %v1135 = vmul.f32 %v1132, %v1134
        %v1136 = vadd.f32 %v1132, %v1135
        %vm1137 = vweird.f32 %v1128
        %vm1138 = vweird.f32 %v1132
        %vm1139 = vmor %vm1137, %vm1138
        %v1140 = vsel %vm1139, %v1132, %v1136
        %v1141 = vand.u32 2147483647, %v1128
        %vm1142 = vcmp.eq.f32.partialorder %v1141, 8.507059e+37
        %v1143 = vand.u32 %v1128, 2147483648
        %v1144 = vor.u32 1.1754944e-38, %v1143
        %v1145 = vsel %vm1142, %v1144, %v1140
        %v1146 = vrcp.pop %v1131
        %v1147 = vmul.f32 %v1131, %v1146
        %v1148 = vsub.f32 1.0, %v1147
        %v1149 = vmul.f32 %v1146, %v1148
        %v1150 = vadd.f32 %v1146, %v1149
        %vm1151 = vweird.f32 %v1131
        %vm1152 = vweird.f32 %v1146
        %vm1153 = vmor %vm1151, %vm1152
        %v1154 = vsel %vm1153, %v1146, %v1150
        %v1155 = vand.u32 2147483647, %v1131
        %vm1156 = vcmp.eq.f32.partialorder %v1155, 8.507059e+37
        %v1157 = vand.u32 %v1131, 2147483648
        %v1158 = vor.u32 1.1754944e-38, %v1157
        %v1159 = vsel %vm1156, %v1158, %v1154
        %v1160 = vmul.f32 %v1123, %v1145
        %v1161 = vmul.f32 %v1125, %v1159
        %1162 = vrot.lane.b32.xlu0 %v671, 112
        %v1163 = vpop.permute.xlu0 %1162
        %v1166 = vsel %vm685, %v1160, 0
        %1168 = vmatpush.msra.mxu0 0.0
        %1169 = vmatpush.msra.mxu0 0.0
        %1170 = vmatpush.msra.mxu0 0.0
        %1171 = vmatpush.msra.mxu0 0.0
        %1172 = vmatpush.msra.mxu0 0.0
        %1173 = vmatpush.msra.mxu0 0.0
        %1174 = vmatpush.msra.mxu0 0.0
        %1175 = vmatpush.msra.mxu0 0.0
        %1176 = vmatpush.msra.mxu0 0.0
        %1177 = vmatpush.msra.mxu0 0.0
        %1178 = vmatpush.msra.mxu0 0.0
        %1179 = vmatpush.msra.mxu0 0.0
        %1180 = vmatpush.msra.mxu0 0.0
        %1181 = vmatpush.msra.mxu0 0.0
        %1182 = vmatpush.msra.mxu0 0.0
        %1183 = vmatpush.msra.mxu0 %v1163
        %1184 = vmatmul.f32.gmra.mxu0 %v1166
        %v1185 = vpop.f32.mrf.mxu0
        %v1186 = vadd.f32 0.0, %v1185
        %1187 = vdwg.mxu0
        %1188 = vrot.lane.b32.xlu0 %v674, 112
        %v1189 = vpop.permute.xlu0 %1188
        %v1192 = vsel %vm685, %v1161, 0
        %1194 = vmatpush.msra.mxu0 0.0
        %1195 = vmatpush.msra.mxu0 0.0
        %1196 = vmatpush.msra.mxu0 0.0
        %1197 = vmatpush.msra.mxu0 0.0
        %1198 = vmatpush.msra.mxu0 0.0
        %1199 = vmatpush.msra.mxu0 0.0
        %1200 = vmatpush.msra.mxu0 0.0
        %1201 = vmatpush.msra.mxu0 0.0
        %1202 = vmatpush.msra.mxu0 0.0
        %1203 = vmatpush.msra.mxu0 0.0
        %1204 = vmatpush.msra.mxu0 0.0
        %1205 = vmatpush.msra.mxu0 0.0
        %1206 = vmatpush.msra.mxu0 0.0
        %1207 = vmatpush.msra.mxu0 0.0
        %1208 = vmatpush.msra.mxu0 0.0
        %1209 = vmatpush.msra.mxu0 %v1189
        %1210 = vmatmul.f32.gmra.mxu0 %v1192
        %v1211 = vpop.f32.mrf.mxu0
        %v1212 = vadd.f32 0.0, %v1211
        %1213 = vdwg.mxu0
        %v1215 = vsel %vm685, %v1186, 0
        %v1218 = vsel %vm685, %v1212, 0
        %1220 = vmatpush.msra.mxu0 0.0
        %1221 = vmatpush.msra.mxu0 0.0
        %1222 = vmatpush.msra.mxu0 0.0
        %1223 = vmatpush.msra.mxu0 0.0
        %1224 = vmatpush.msra.mxu0 0.0
        %1225 = vmatpush.msra.mxu0 0.0
        %1226 = vmatpush.msra.mxu0 0.0
        %1227 = vmatpush.msra.mxu0 0.0
        %1228 = vmatpush.msra.mxu0 0.0
        %1229 = vmatpush.msra.mxu0 0.0
        %1230 = vmatpush.msra.mxu0 0.0
        %1231 = vmatpush.msra.mxu0 0.0
        %1232 = vmatpush.msra.mxu0 0.0
        %1233 = vmatpush.msra.mxu0 0.0
        %1234 = vmatpush.msra.mxu0 0.0
        %1235 = vmatpush.msra.mxu0 %v678
        %1236 = vmatmul.f32.gmra.mxu0 %v1215
        %v1237 = vpop.f32.mrf.mxu0
        %v1238 = vadd.f32 0.0, %v1237
        %1239 = vmatmul.f32.gmra.mxu0 %v1218
        %v1240 = vpop.f32.mrf.mxu0
        %v1241 = vadd.f32 0.0, %v1240
        %1242 = vdwg.mxu0
        %v1243 = vadd.f32 %v1054, %v1238
        %v1244 = vadd.f32 %v1055, %v1241
        %1245 = vrot.lane.b32.xlu0 %v597, 104
        %v1246 = vpop.permute.xlu0 %1245
        %1247 = vrot.lane.b32.xlu0 %v634, 104
        %v1248 = vpop.permute.xlu0 %1247
        %v1249 = vsel %vm685, %v1246, 0
        %v1251 = vsel %vm685, %v1248, 0
        %1253 = vmatpush.xpose.msra.mxu0 0.0
        %1254 = vmatpush.xpose.msra.mxu0 0.0
        %1255 = vmatpush.xpose.msra.mxu0 0.0
        %1256 = vmatpush.xpose.msra.mxu0 0.0
        %1257 = vmatpush.xpose.msra.mxu0 0.0
        %1258 = vmatpush.xpose.msra.mxu0 0.0
        %1259 = vmatpush.xpose.msra.mxu0 0.0
        %1260 = vmatpush.xpose.msra.mxu0 0.0
        %1261 = vmatpush.xpose.msra.mxu0 0.0
        %1262 = vmatpush.xpose.msra.mxu0 0.0
        %1263 = vmatpush.xpose.msra.mxu0 0.0
        %1264 = vmatpush.xpose.msra.mxu0 0.0
        %1265 = vmatpush.xpose.msra.mxu0 0.0
        %1266 = vmatpush.xpose.msra.mxu0 0.0
        %1267 = vmatpush.xpose.msra.mxu0 0.0
        %1268 = vmatpush.xpose.msra.mxu0 %v1251
        %1269 = vmatmul.f32.gmra.mxu0 %v1249
        %v1270 = vpop.f32.mrf.mxu0
        %v1271 = vadd.f32 0.0, %v1270
        %1272 = vdwg.mxu0
        %1273 = vrot.lane.b32.xlu0 %v600, 104
        %v1274 = vpop.permute.xlu0 %1273
        %1275 = vrot.lane.b32.xlu0 %v637, 104
        %v1276 = vpop.permute.xlu0 %1275
        %v1277 = vsel %vm685, %v1274, 0
        %v1279 = vsel %vm685, %v1276, 0
        %1281 = vmatpush.xpose.msra.mxu0 0.0
        %1282 = vmatpush.xpose.msra.mxu0 0.0
        %1283 = vmatpush.xpose.msra.mxu0 0.0
        %1284 = vmatpush.xpose.msra.mxu0 0.0
        %1285 = vmatpush.xpose.msra.mxu0 0.0
        %1286 = vmatpush.xpose.msra.mxu0 0.0
        %1287 = vmatpush.xpose.msra.mxu0 0.0
        %1288 = vmatpush.xpose.msra.mxu0 0.0
        %1289 = vmatpush.xpose.msra.mxu0 0.0
        %1290 = vmatpush.xpose.msra.mxu0 0.0
        %1291 = vmatpush.xpose.msra.mxu0 0.0
        %1292 = vmatpush.xpose.msra.mxu0 0.0
        %1293 = vmatpush.xpose.msra.mxu0 0.0
        %1294 = vmatpush.xpose.msra.mxu0 0.0
        %1295 = vmatpush.xpose.msra.mxu0 0.0
        %1296 = vmatpush.xpose.msra.mxu0 %v1279
        %1297 = vmatmul.f32.gmra.mxu0 %v1277
        %v1298 = vpop.f32.mrf.mxu0
        %v1299 = vadd.f32 0.0, %v1298
        %1300 = vdwg.mxu0
        %v1301 = vmul.f32 %v1271, 2.828427
        %v1302 = vmul.f32 %v1299, 2.828427
        %v1303 = vsel %vm685, %v1301, -inf
        %1304 = vmax.xlane.f32.xlu0 %v1303
        %v1305 = vpop.xlane.xlu0 %1304
        %v1306 = vsel %vm685, %v1302, -inf
        %1307 = vmax.xlane.f32.xlu0 %v1306
        %v1308 = vpop.xlane.xlu0 %1307
        %v1309 = vsub.f32 %v1301, %v1305
        %v1310 = vsub.f32 %v1302, %v1308
        %v1311 = vmul.f32 %v1309, 1.442695
        %v1312 = vpow.pop %v1311
        %v1313 = vmul.f32 %v1310, 1.442695
        %v1314 = vpow.pop %v1313
        %v1315 = vsel %vm685, %v1312, 0.0
        %1316 = vadd.xlane.f32.xlu0 %v1315
        %v1317 = vpop.xlane.xlu0 %1316
        %v1318 = vsel %vm685, %v1314, 0.0
        %1319 = vadd.xlane.f32.xlu0 %v1318
        %v1320 = vpop.xlane.xlu0 %1319
        %v1321 = vrcp.pop %v1317
        %v1322 = vmul.f32 %v1317, %v1321
        %v1323 = vsub.f32 1.0, %v1322
        %v1324 = vmul.f32 %v1321, %v1323
        %v1325 = vadd.f32 %v1321, %v1324
        %vm1326 = vweird.f32 %v1317
        %vm1327 = vweird.f32 %v1321
        %vm1328 = vmor %vm1326, %vm1327
        %v1329 = vsel %vm1328, %v1321, %v1325
        %v1330 = vand.u32 2147483647, %v1317
        %vm1331 = vcmp.eq.f32.partialorder %v1330, 8.507059e+37
        %v1332 = vand.u32 %v1317, 2147483648
        %v1333 = vor.u32 1.1754944e-38, %v1332
        %v1334 = vsel %vm1331, %v1333, %v1329
        %v1335 = vrcp.pop %v1320
        %v1336 = vmul.f32 %v1320, %v1335
        %v1337 = vsub.f32 1.0, %v1336
        %v1338 = vmul.f32 %v1335, %v1337
        %v1339 = vadd.f32 %v1335, %v1338
        %vm1340 = vweird.f32 %v1320
        %vm1341 = vweird.f32 %v1335
        %vm1342 = vmor %vm1340, %vm1341
        %v1343 = vsel %vm1342, %v1335, %v1339
        %v1344 = vand.u32 2147483647, %v1320
        %vm1345 = vcmp.eq.f32.partialorder %v1344, 8.507059e+37
        %v1346 = vand.u32 %v1320, 2147483648
        %v1347 = vor.u32 1.1754944e-38, %v1346
        %v1348 = vsel %vm1345, %v1347, %v1343
        %v1349 = vmul.f32 %v1312, %v1334
        %v1350 = vmul.f32 %v1314, %v1348
        %1351 = vrot.lane.b32.xlu0 %v671, 104
        %v1352 = vpop.permute.xlu0 %1351
        %v1355 = vsel %vm685, %v1349, 0
        %1357 = vmatpush.msra.mxu0 0.0
        %1358 = vmatpush.msra.mxu0 0.0
        %1359 = vmatpush.msra.mxu0 0.0
        %1360 = vmatpush.msra.mxu0 0.0
        %1361 = vmatpush.msra.mxu0 0.0
        %1362 = vmatpush.msra.mxu0 0.0
        %1363 = vmatpush.msra.mxu0 0.0
        %1364 = vmatpush.msra.mxu0 0.0
        %1365 = vmatpush.msra.mxu0 0.0
        %1366 = vmatpush.msra.mxu0 0.0
        %1367 = vmatpush.msra.mxu0 0.0
        %1368 = vmatpush.msra.mxu0 0.0
        %1369 = vmatpush.msra.mxu0 0.0
        %1370 = vmatpush.msra.mxu0 0.0
        %1371 = vmatpush.msra.mxu0 0.0
        %1372 = vmatpush.msra.mxu0 %v1352
        %1373 = vmatmul.f32.gmra.mxu0 %v1355
        %v1374 = vpop.f32.mrf.mxu0
        %v1375 = vadd.f32 0.0, %v1374
        %1376 = vdwg.mxu0
        %1377 = vrot.lane.b32.xlu0 %v674, 104
        %v1378 = vpop.permute.xlu0 %1377
        %v1381 = vsel %vm685, %v1350, 0
        %1383 = vmatpush.msra.mxu0 0.0
        %1384 = vmatpush.msra.mxu0 0.0
        %1385 = vmatpush.msra.mxu0 0.0
        %1386 = vmatpush.msra.mxu0 0.0
        %1387 = vmatpush.msra.mxu0 0.0
        %1388 = vmatpush.msra.mxu0 0.0
        %1389 = vmatpush.msra.mxu0 0.0
        %1390 = vmatpush.msra.mxu0 0.0
        %1391 = vmatpush.msra.mxu0 0.0
        %1392 = vmatpush.msra.mxu0 0.0
        %1393 = vmatpush.msra.mxu0 0.0
        %1394 = vmatpush.msra.mxu0 0.0
        %1395 = vmatpush.msra.mxu0 0.0
        %1396 = vmatpush.msra.mxu0 0.0
        %1397 = vmatpush.msra.mxu0 0.0
        %1398 = vmatpush.msra.mxu0 %v1378
        %1399 = vmatmul.f32.gmra.mxu0 %v1381
        %v1400 = vpop.f32.mrf.mxu0
        %v1401 = vadd.f32 0.0, %v1400
        %1402 = vdwg.mxu0
        %v1404 = vsel %vm685, %v1375, 0
        %v1407 = vsel %vm685, %v1401, 0
        %1409 = vmatpush.msra.mxu0 0.0
        %1410 = vmatpush.msra.mxu0 0.0
        %1411 = vmatpush.msra.mxu0 0.0
        %1412 = vmatpush.msra.mxu0 0.0
        %1413 = vmatpush.msra.mxu0 0.0
        %1414 = vmatpush.msra.mxu0 0.0
        %1415 = vmatpush.msra.mxu0 0.0
        %1416 = vmatpush.msra.mxu0 0.0
        %1417 = vmatpush.msra.mxu0 0.0
        %1418 = vmatpush.msra.mxu0 0.0
        %1419 = vmatpush.msra.mxu0 0.0
        %1420 = vmatpush.msra.mxu0 0.0
        %1421 = vmatpush.msra.mxu0 0.0
        %1422 = vmatpush.msra.mxu0 0.0
        %1423 = vmatpush.msra.mxu0 0.0
        %1424 = vmatpush.msra.mxu0 %v679
        %1425 = vmatmul.f32.gmra.mxu0 %v1404
        %v1426 = vpop.f32.mrf.mxu0
        %v1427 = vadd.f32 0.0, %v1426
        %1428 = vmatmul.f32.gmra.mxu0 %v1407
        %v1429 = vpop.f32.mrf.mxu0
        %v1430 = vadd.f32 0.0, %v1429
        %1431 = vdwg.mxu0
        %v1432 = vadd.f32 %v1243, %v1427
        %v1433 = vadd.f32 %v1244, %v1430
        %1434 = vst.msk [vmem:[%s553] sm:$0xff] %vm572, %v1432
        %1435 = vst.msk [vmem:[%s553 + $0x8] sm:$0xff] %vm572, %v1433
        %s1436 = sand.u32 %s287, 1
        %s1437 = scalar_lea.sflag [#allocation4], %s1436
        %s1438 = sand.u32 %s287, 1
        %s1439 = smul.addr %s1438, 16
        %s1440 = scalar_lea.vmem [#allocation14], %s1439
        // Predicated region
        $region93: #{tpu_custom_call.1} parent=63 // pred_check
          %p1441 = pneg %p297
        $region94: #{tpu_custom_call.1} parent=63 // pred_check_branch
          %1443 = sbr.rel (%p1441) target = $region96
        $region95: #{tpu_custom_call.1} parent=63 // pred_region
          %s1444 = smul.u32 2, %s33
          %1446 = vsyncadd %s1437, 0
          %s1447 = smul.addr %s1444, 8
          %s1448 = scalar_lea.hbm %s11, %s1447
          %s1449 = sshll.u32 %s1440, 4
          %s1450 = int_to_ptr.vmem [resolvable:$true] %s1449
          %s1451 = sshll.u32 %s1448, 4
          %s1452 = int_to_ptr.hbm [resolvable:$true] %s1451
          %1457 = dma.vmem_to_hbm [thread:$0]  %s1450, 256, %s1452, %s1437, 128, 128, 8
        $region96: #{tpu_custom_call.1} parent=63 // pred_fallthru
          _
      $region64: #{tpu_custom_call.1} parent=5 // pred_fallthru
        _
      %p1458 = scmp.le.s32.totalorder 2, %s28
      // Predicated region
      $region97: #{tpu_custom_call.1} parent=5 // pred_check
        %p1459 = pneg %p1458
      $region98: #{tpu_custom_call.1} parent=5 // pred_check_branch
        %1461 = sbr.rel (%p1459) target = $region100
      $region99: #{tpu_custom_call.1} parent=5 // pred_region
        %s1462 = ssub.s32 %s28, 2
        // Predicated region
        $region101: #{tpu_custom_call.1} parent=99 // pred_check
          %p1463 = pneg %p303
        $region102: #{tpu_custom_call.1} parent=99 // pred_check_branch
          %1465 = sbr.rel (%p1463) target = $region104
        $region103: #{tpu_custom_call.1} parent=99 // pred_region
          %s1466 = sand.u32 %s288, 1
          %s1467 = scalar_lea.sflag [#allocation4], %s1466
          %s1468 = sand.u32 %s288, 1
          %s1469 = smul.addr %s1468, 16
          %s1470 = scalar_lea.vmem [#allocation14], %s1469
          %1472 = dma.done %s1467, 256
        $region104: #{tpu_custom_call.1} parent=99 // pred_fallthru
          _
      $region100: #{tpu_custom_call.1} parent=5 // pred_fallthru
        _
    $region6: #{tpu_custom_call.1} parent=1 // loop_footer
      %s32 = sadd.s32 1, %s28
    $region7: #{tpu_custom_call.1} parent=1 // loop_footer_branch
      %27 = sbr.rel target = $region3
    $region8: #{tpu_custom_call.1} parent=1 // loop_exit
      _
    %1473 = vsyncpa [#allocation3], 1
    %s1474 = scalar_lea.sflag [#allocation3], 1
    %1475 = vsyncpa %s1474, 1
    %1476 = vsyncpa [#allocation6], 1
    %s1477 = scalar_lea.sflag [#allocation6], 1
    %1478 = vsyncpa %s1477, 1
    %1479 = vsyncpa [#allocation9], 1
    %1480 = vsyncpa [#allocation12], 1
    %1481 = vsyncpa [#allocation4], 1
    %s1482 = scalar_lea.sflag [#allocation4], 1
    %1483 = vsyncpa %s1482, 1

</llo_original>
